<compile_context>
chip_gen: v7x
topology: tpu7x:2x2x1
jax: 0.10.0
libtpu: 0.0.40
codegen_flags: <defaults>
</compile_context>

<pallas_src>
import functools

import jax
import jax.numpy as jnp
from jax.experimental import pallas as pl
from jax.experimental.pallas import tpu as pltpu

DENSE_DIM = 128
NUM_OBJECTIVES = 6
OUT_PAD = 8                # stored output lanes: 6 real + 2 pad
NEG_INF = -1e30            # masks padded logit lanes in the softmax

ROW_ALIGN = 256            # batch-tile granularity (sublane/MXU friendly)
MAX_TILE_B = 2048          # ~3 MiB of activations/step, far under VMEM limits


def critic_kernel(x_ref, w_in_ref, w_hid_ref, w_out_ref, b_ref, out_ref):
    f32 = jnp.float32
    bf16 = jnp.bfloat16

    # input_layer + ReLU  (x already bf16; bf16 MXU operands, f32 accumulation)
    h = jnp.dot(x_ref[...], w_in_ref[...],
                preferred_element_type=f32) + b_ref[0, :]
    h = jnp.maximum(h, 0.0)

    # hidden_1..hidden_3 + ReLU (stacked weights, static index into (3,128,128))
    # NOTE: h is re-cast to bf16 per layer for the MXU; error compounds over
    # 5 matmuls -> ~2e-2 vs an f32 reference (acceptable for a critic).
    for k in range(3):
        h = jnp.dot(h.astype(bf16), w_hid_ref[k],
                    preferred_element_type=f32) + b_ref[k + 1, :]
        h = jnp.maximum(h, 0.0)

    # output_layer, computed at 128 lanes (padded bias lanes = -1e30 so the
    # softmax ignores them; valid only while real logits stay finite).
    logits = jnp.dot(h.astype(bf16), w_out_ref[...],
                     preferred_element_type=f32) + b_ref[4, :]

    # Numerically stable softmax; padded lanes underflow to exactly 0.
    m = jnp.max(logits, axis=-1, keepdims=True)
    e = jnp.exp(logits - m)
    denom = jnp.sum(e, axis=-1, keepdims=True)
    probs = e * pl.reciprocal(denom, approx=False)   # exact-ish normalization, still EUP

    # Store only the narrow output block (6 real + 2 pad lanes) -> ~16x less
    # HBM writeback than a 128-lane f32 slab.
    out_ref[...] = probs[:, :OUT_PAD].astype(out_ref.dtype)


def _round_up(n, m):
    return -(-n // m) * m


def _choose_tile_b(batch):
    """Same policy for v5e/v6e/v7x: biggest aligned tile (cap MAX_TILE_B),
    but keep >= 2 grid steps when the batch allows (v7x dual-TC sharding)."""
    b_align = max(ROW_ALIGN, _round_up(batch, ROW_ALIGN))
    if b_align <= ROW_ALIGN:
        return b_align
    half = _round_up(b_align // 2, ROW_ALIGN)
    return min(MAX_TILE_B, half)


@functools.partial(jax.jit, static_argnames=("tile_b",))
def critic_forward(x, packed_params, tile_b=256):
    """x: (B, state_dim) float32.
    packed_params = (w_in (state_dim,128) bf16,
                     w_hid (3,128,128) bf16,
                     w_out (128,128) bf16 (zero-padded cols 6..127),
                     biases (5,128) f32  (row 4 padded with -1e30))."""
    w_in, w_hid, w_out, biases = packed_params
    B, state_dim = x.shape

    n_tiles = pl.cdiv(B, tile_b)
    b_pad = n_tiles * tile_b

    # Halve the x HBM read into the kernel; the cast rides the pad copy when
    # one is needed, and is the only extra pass otherwise.
    x = x.astype(jnp.bfloat16)
    if b_pad != B:
        x = jnp.pad(x, ((0, b_pad - B), (0, 0)))

    out = pl.pallas_call(
        critic_kernel,
        out_shape=jax.ShapeDtypeStruct((b_pad, OUT_PAD), jnp.float32),
        grid=(n_tiles,),
        in_specs=[
            pl.BlockSpec((tile_b, state_dim), lambda i: (i, 0)),           # x tile (bf16)
            pl.BlockSpec((state_dim, DENSE_DIM), lambda i: (0, 0)),        # w_in (resident)
            pl.BlockSpec((3, DENSE_DIM, DENSE_DIM), lambda i: (0, 0, 0)),  # hidden ws (resident)
            pl.BlockSpec((DENSE_DIM, DENSE_DIM), lambda i: (0, 0)),        # w_out (resident)
            pl.BlockSpec((5, DENSE_DIM), lambda i: (0, 0)),                # biases (resident)
        ],
        out_specs=pl.BlockSpec((tile_b, OUT_PAD), lambda i: (i, 0)),
        compiler_params=pltpu.CompilerParams(
            dimension_semantics=("parallel",)),
    )(x, w_in, w_hid, w_out, biases)

    return out[:B, :NUM_OBJECTIVES]


def init_linear(key, in_dim, out_dim):
    """Deterministic PyTorch-style Linear init: U(-1/sqrt(in), 1/sqrt(in)).
    Weight stored pre-transposed as (in_dim, out_dim) == W_torch.T."""
    kw, kb = jax.random.split(key)
    bound = 1.0 / jnp.sqrt(jnp.float32(in_dim))
    w = jax.random.uniform(kw, (in_dim, out_dim), jnp.float32, -bound, bound)
    b = jax.random.uniform(kb, (out_dim,), jnp.float32, -bound, bound)
    return w, b


def pack_params(param_pairs):
    """Pack f32 (w,b) pairs into the kernel layout described above."""
    (w1, b1), (w2, b2), (w3, b3), (w4, b4), (w5, b5) = param_pairs
    w_in = w1.astype(jnp.bfloat16)
    w_hid = jnp.stack([w2, w3, w4], axis=0).astype(jnp.bfloat16)
    w_out = jnp.zeros((DENSE_DIM, DENSE_DIM), jnp.float32)
    w_out = w_out.at[:, :NUM_OBJECTIVES].set(w5).astype(jnp.bfloat16)
    b5_pad = jnp.full((DENSE_DIM,), NEG_INF, jnp.float32)
    b5_pad = b5_pad.at[:NUM_OBJECTIVES].set(b5)
    biases = jnp.stack([b1, b2, b3, b4, b5_pad], axis=0)  # (5,128) f32
    return (w_in, w_hid, w_out, biases)


def reference_forward(x, param_pairs):
    """Pure-JAX f32 reference of the same forward pass."""
    h = x
    for w, b in param_pairs[:-1]:
        h = jnp.maximum(h @ w + b, 0.0)
    w5, b5 = param_pairs[-1]
    logits = h @ w5 + b5
    return jax.nn.softmax(logits, axis=-1)


if __name__ == "__main__":
    num_components = 8              # state_dim = 4 * num_components = 32
    state_dim = 4 * num_components
    batch = 512                     # -> tile_b=256, 2 parallel grid steps

    key = jax.random.PRNGKey(0)
    k_in, k1, k2, k3, k4, k5 = jax.random.split(key, 6)

    param_pairs = [
        init_linear(k1, state_dim, DENSE_DIM),
        init_linear(k2, DENSE_DIM, DENSE_DIM),
        init_linear(k3, DENSE_DIM, DENSE_DIM),
        init_linear(k4, DENSE_DIM, DENSE_DIM),
        init_linear(k5, DENSE_DIM, NUM_OBJECTIVES),
    ]
    packed = pack_params(param_pairs)
    x = jax.random.normal(k_in, (batch, state_dim), jnp.float32)

    tile_b = _choose_tile_b(batch)
    out = critic_forward(x, packed, tile_b=tile_b)
    out = jax.block_until_ready(out)

    ref = reference_forward(x, param_pairs)
    assert out.shape == (batch, NUM_OBJECTIVES)
    assert jnp.allclose(jnp.sum(out, axis=-1), 1.0, atol=1e-3), "softmax rows must sum to 1"
    # bf16 weights/activations on the MXU -> loosened tolerance vs f32 reference.
    assert jnp.allclose(out, ref, atol=2e-2, rtol=2e-2), "mismatch vs f32 reference"

    print("KERNEL_OK")
</pallas_src>

<mosaic_0001>
module attributes {stable_mosaic.version = 11 : i64} {
  func.func @critic_kernel(%arg0: i32, %arg1: memref<256x32xbf16, #tpu.memory_space<vmem>>, %arg2: memref<32x128xbf16, #tpu.memory_space<vmem>>, %arg3: memref<3x128x128xbf16, #tpu.memory_space<vmem>>, %arg4: memref<128x128xbf16, #tpu.memory_space<vmem>>, %arg5: memref<5x128xf32, #tpu.memory_space<vmem>>, %arg6: memref<256x8xf32, #tpu.memory_space<vmem>>) attributes {dimension_semantics = [#tpu.dimension_semantics<parallel>], iteration_bounds = array<i64: 2>, scalar_prefetch = 0 : i64, scratch_operands = 0 : i64, tpu.core_type = #tpu.core_type<tc>, window_params = [{transform_indices = @transform_0, window_bounds = array<i64: 256, 32>}, {pipeline_mode = #tpu.pipeline_mode<synchronous>, transform_indices = @transform_1, window_bounds = array<i64: 32, 128>}, {pipeline_mode = #tpu.pipeline_mode<synchronous>, transform_indices = @transform_2, window_bounds = array<i64: 3, 128, 128>}, {pipeline_mode = #tpu.pipeline_mode<synchronous>, transform_indices = @transform_3, window_bounds = array<i64: 128, 128>}, {pipeline_mode = #tpu.pipeline_mode<synchronous>, transform_indices = @transform_4, window_bounds = array<i64: 5, 128>}, {transform_indices = @transform_5, window_bounds = array<i64: 256, 8>}]} {
    %c0 = arith.constant 0 : index
    %c0_0 = arith.constant 0 : index
    %0 = vector.load %arg1[%c0, %c0_0] : memref<256x32xbf16, #tpu.memory_space<vmem>>, vector<256x32xbf16>
    %c0_1 = arith.constant 0 : index
    %c0_2 = arith.constant 0 : index
    %1 = vector.load %arg2[%c0_1, %c0_2] : memref<32x128xbf16, #tpu.memory_space<vmem>>, vector<32x128xbf16>
    %cst = arith.constant dense<0.000000e+00> : vector<256x128xf32>
    %2 = tpu.matmul %0, %1, %cst {dimension_numbers = #tpu.dot_dimension_numbers<[1], [0], [0], [1], [0, 0, 1, 1], [], []>} : vector<256x32xbf16>, vector<32x128xbf16>, vector<256x128xf32> -> vector<256x128xf32>
    %c0_3 = arith.constant 0 : index
    %c0_4 = arith.constant 0 : index
    %3 = vector.load %arg5[%c0_3, %c0_4] : memref<5x128xf32, #tpu.memory_space<vmem>>, vector<1x128xf32>
    %4 = vector.shape_cast %3 : vector<1x128xf32> to vector<128xf32>
    %5 = vector.shape_cast %4 : vector<128xf32> to vector<1x128xf32>
    %6 = vector.broadcast %5 : vector<1x128xf32> to vector<256x128xf32>
    %7 = arith.addf %2, %6 : vector<256x128xf32>
    %cst_5 = arith.constant 0.000000e+00 : f32
    %8 = vector.broadcast %cst_5 : f32 to vector<256x128xf32>
    %9 = arith.maximumf %7, %8 : vector<256x128xf32>
    %10 = arith.truncf %9 : vector<256x128xf32> to vector<256x128xbf16>
    %c0_6 = arith.constant 0 : index
    %c0_7 = arith.constant 0 : index
    %c0_8 = arith.constant 0 : index
    %11 = vector.load %arg3[%c0_6, %c0_7, %c0_8] : memref<3x128x128xbf16, #tpu.memory_space<vmem>>, vector<1x128x128xbf16>
    %12 = vector.shape_cast %11 : vector<1x128x128xbf16> to vector<128x128xbf16>
    %cst_9 = arith.constant dense<0.000000e+00> : vector<256x128xf32>
    %13 = tpu.matmul %10, %12, %cst_9 {dimension_numbers = #tpu.dot_dimension_numbers<[1], [0], [0], [1], [0, 0, 1, 1], [], []>} : vector<256x128xbf16>, vector<128x128xbf16>, vector<256x128xf32> -> vector<256x128xf32>
    %c1 = arith.constant 1 : index
    %c0_10 = arith.constant 0 : index
    %14 = vector.load %arg5[%c1, %c0_10] : memref<5x128xf32, #tpu.memory_space<vmem>>, vector<1x128xf32>
    %15 = vector.shape_cast %14 : vector<1x128xf32> to vector<128xf32>
    %16 = vector.shape_cast %15 : vector<128xf32> to vector<1x128xf32>
    %17 = vector.broadcast %16 : vector<1x128xf32> to vector<256x128xf32>
    %18 = arith.addf %13, %17 : vector<256x128xf32>
    %cst_11 = arith.constant 0.000000e+00 : f32
    %19 = vector.broadcast %cst_11 : f32 to vector<256x128xf32>
    %20 = arith.maximumf %18, %19 : vector<256x128xf32>
    %21 = arith.truncf %20 : vector<256x128xf32> to vector<256x128xbf16>
    %c1_12 = arith.constant 1 : index
    %c0_13 = arith.constant 0 : index
    %c0_14 = arith.constant 0 : index
    %22 = vector.load %arg3[%c1_12, %c0_13, %c0_14] : memref<3x128x128xbf16, #tpu.memory_space<vmem>>, vector<1x128x128xbf16>
    %23 = vector.shape_cast %22 : vector<1x128x128xbf16> to vector<128x128xbf16>
    %cst_15 = arith.constant dense<0.000000e+00> : vector<256x128xf32>
    %24 = tpu.matmul %21, %23, %cst_15 {dimension_numbers = #tpu.dot_dimension_numbers<[1], [0], [0], [1], [0, 0, 1, 1], [], []>} : vector<256x128xbf16>, vector<128x128xbf16>, vector<256x128xf32> -> vector<256x128xf32>
    %c2 = arith.constant 2 : index
    %c0_16 = arith.constant 0 : index
    %25 = vector.load %arg5[%c2, %c0_16] : memref<5x128xf32, #tpu.memory_space<vmem>>, vector<1x128xf32>
    %26 = vector.shape_cast %25 : vector<1x128xf32> to vector<128xf32>
    %27 = vector.shape_cast %26 : vector<128xf32> to vector<1x128xf32>
    %28 = vector.broadcast %27 : vector<1x128xf32> to vector<256x128xf32>
    %29 = arith.addf %24, %28 : vector<256x128xf32>
    %cst_17 = arith.constant 0.000000e+00 : f32
    %30 = vector.broadcast %cst_17 : f32 to vector<256x128xf32>
    %31 = arith.maximumf %29, %30 : vector<256x128xf32>
    %32 = arith.truncf %31 : vector<256x128xf32> to vector<256x128xbf16>
    %c2_18 = arith.constant 2 : index
    %c0_19 = arith.constant 0 : index
    %c0_20 = arith.constant 0 : index
    %33 = vector.load %arg3[%c2_18, %c0_19, %c0_20] : memref<3x128x128xbf16, #tpu.memory_space<vmem>>, vector<1x128x128xbf16>
    %34 = vector.shape_cast %33 : vector<1x128x128xbf16> to vector<128x128xbf16>
    %cst_21 = arith.constant dense<0.000000e+00> : vector<256x128xf32>
    %35 = tpu.matmul %32, %34, %cst_21 {dimension_numbers = #tpu.dot_dimension_numbers<[1], [0], [0], [1], [0, 0, 1, 1], [], []>} : vector<256x128xbf16>, vector<128x128xbf16>, vector<256x128xf32> -> vector<256x128xf32>
    %c3 = arith.constant 3 : index
    %c0_22 = arith.constant 0 : index
    %36 = vector.load %arg5[%c3, %c0_22] : memref<5x128xf32, #tpu.memory_space<vmem>>, vector<1x128xf32>
    %37 = vector.shape_cast %36 : vector<1x128xf32> to vector<128xf32>
    %38 = vector.shape_cast %37 : vector<128xf32> to vector<1x128xf32>
    %39 = vector.broadcast %38 : vector<1x128xf32> to vector<256x128xf32>
    %40 = arith.addf %35, %39 : vector<256x128xf32>
    %cst_23 = arith.constant 0.000000e+00 : f32
    %41 = vector.broadcast %cst_23 : f32 to vector<256x128xf32>
    %42 = arith.maximumf %40, %41 : vector<256x128xf32>
    %43 = arith.truncf %42 : vector<256x128xf32> to vector<256x128xbf16>
    %c0_24 = arith.constant 0 : index
    %c0_25 = arith.constant 0 : index
    %44 = vector.load %arg4[%c0_24, %c0_25] : memref<128x128xbf16, #tpu.memory_space<vmem>>, vector<128x128xbf16>
    %cst_26 = arith.constant dense<0.000000e+00> : vector<256x128xf32>
    %45 = tpu.matmul %43, %44, %cst_26 {dimension_numbers = #tpu.dot_dimension_numbers<[1], [0], [0], [1], [0, 0, 1, 1], [], []>} : vector<256x128xbf16>, vector<128x128xbf16>, vector<256x128xf32> -> vector<256x128xf32>
    %c4 = arith.constant 4 : index
    %c0_27 = arith.constant 0 : index
    %46 = vector.load %arg5[%c4, %c0_27] : memref<5x128xf32, #tpu.memory_space<vmem>>, vector<1x128xf32>
    %47 = vector.shape_cast %46 : vector<1x128xf32> to vector<128xf32>
    %48 = vector.shape_cast %47 : vector<128xf32> to vector<1x128xf32>
    %49 = vector.broadcast %48 : vector<1x128xf32> to vector<256x128xf32>
    %50 = arith.addf %45, %49 : vector<256x128xf32>
    %cst_28 = arith.constant dense<0xFF800000> : vector<256xf32>
    %51 = vector.multi_reduction <maximumf>, %50, %cst_28 [1] : vector<256x128xf32> to vector<256xf32>
    %52 = vector.shape_cast %51 : vector<256xf32> to vector<256x1xf32>
    %53 = vector.broadcast %52 : vector<256x1xf32> to vector<256x128xf32>
    %54 = arith.subf %50, %53 : vector<256x128xf32>
    %55 = math.exp %54 : vector<256x128xf32>
    %cst_29 = arith.constant dense<0.000000e+00> : vector<256xf32>
    %56 = vector.multi_reduction <add>, %55, %cst_29 [1] : vector<256x128xf32> to vector<256xf32>
    %57 = vector.shape_cast %56 : vector<256xf32> to vector<256x1xf32>
    %58 = tpu.reciprocal %57 : vector<256x1xf32> -> vector<256x1xf32>
    %59 = vector.broadcast %58 : vector<256x1xf32> to vector<256x128xf32>
    %60 = arith.mulf %55, %59 : vector<256x128xf32>
    %61 = vector.extract_strided_slice %60 {offsets = [0, 0], sizes = [256, 8], strides = [1, 1]} : vector<256x128xf32> to vector<256x8xf32>
    %c0_30 = arith.constant 0 : index
    %c0_31 = arith.constant 0 : index
    %62 = vector.load %arg6[%c0_30, %c0_31] : memref<256x8xf32, #tpu.memory_space<vmem>>, vector<256x8xf32>
    tpu.vector_store %arg6[%c0_30, %c0_31], %61 {strides = array<i32>} : memref<256x8xf32, #tpu.memory_space<vmem>>, vector<256x8xf32>,
    return
  }
  func.func @transform_0(%arg0: i32) -> (i32, i32) {
    %c0_i32 = arith.constant 0 : i32
    %c0_i32_0 = arith.constant 0 : i32
    return %arg0, %c0_i32 : i32, i32
  }
  func.func @transform_1(%arg0: i32) -> (i32, i32) {
    %c0_i32 = arith.constant 0 : i32
    %c0_i32_0 = arith.constant 0 : i32
    %c0_i32_1 = arith.constant 0 : i32
    return %c0_i32, %c0_i32_0 : i32, i32
  }
  func.func @transform_2(%arg0: i32) -> (i32, i32, i32) {
    %c0_i32 = arith.constant 0 : i32
    %c0_i32_0 = arith.constant 0 : i32
    %c0_i32_1 = arith.constant 0 : i32
    %c0_i32_2 = arith.constant 0 : i32
    return %c0_i32, %c0_i32_0, %c0_i32_1 : i32, i32, i32
  }
  func.func @transform_3(%arg0: i32) -> (i32, i32) {
    %c0_i32 = arith.constant 0 : i32
    %c0_i32_0 = arith.constant 0 : i32
    %c0_i32_1 = arith.constant 0 : i32
    return %c0_i32, %c0_i32_0 : i32, i32
  }
  func.func @transform_4(%arg0: i32) -> (i32, i32) {
    %c0_i32 = arith.constant 0 : i32
    %c0_i32_0 = arith.constant 0 : i32
    %c0_i32_1 = arith.constant 0 : i32
    return %c0_i32, %c0_i32_0 : i32, i32
  }
  func.func @transform_5(%arg0: i32) -> (i32, i32) {
    %c0_i32 = arith.constant 0 : i32
    %c0_i32_0 = arith.constant 0 : i32
    return %arg0, %c0_i32 : i32, i32
  }
}

</mosaic_0001>

<llo_original>
// kernel: critic_forward.1
$region0: #{critic_forward.1}
  #allocation0 [shape = 'u32[]', space=smem, size = 0x4, offset = 0x4, fixed_abs, tag = 'smem constant byte address 0x4 - core index']
  #allocation1 [shape = 'u32[144,128]{1,0:T(1,128)}', space=vmem, size = 0x12000, scoped, tag = 'internal scratch']
  %s0 = inlined_call_operand.vmem [shape: bf16[512,32], index: 0, kind: input, shape index: {}]
  %s1 = inlined_call_operand.vmem [shape: bf16[32,128], index: 1, kind: input, shape index: {}]
  %s2 = inlined_call_operand.vmem [shape: bf16[3,128,128], index: 2, kind: input, shape index: {}]
  %s3 = inlined_call_operand.vmem [shape: bf16[128,128], index: 3, kind: input, shape index: {}]
  %s4 = inlined_call_operand.vmem [shape: f32[5,128], index: 4, kind: input, shape index: {}]
  %s5 = inlined_call_operand.vmem [shape: f32[512,8], index: 5, kind: output, shape index: {}]
  %s6 = sld [smem:[#allocation0]]
  $region53: #{critic_forward.1} parent=0
    _
  %s8 = ssub.s32 1, %s6
  %s9 = scalar_select 0, %s8, %s6
  loop: start=0, step=1, limit=4
  $region2: #{critic_forward.1} parent=0 // loop_pre_header
    _
  $region3: #{critic_forward.1} parent=0 // loop_header
    %s11 = sphi 0, %s15
    %p12 = scmp.ge.s32.totalorder %s11, 4
    %s21 = sphi 0, %s23
    %s24 = sphi 0, %s21
    %s25 = sphi 0, %s24
    %s41 = sphi 0, %s25
    %s45 = sphi 0, %s45
    %s47 = sphi 0, %s45
    %s48 = sphi 0, %s47
    %s62 = sphi 0, %s48
    %s66 = sphi 0, %s66
    %s68 = sphi 0, %s66
    %s69 = sphi 0, %s68
    %s83 = sphi 0, %s69
    %s87 = sphi 0, %s87
    %s89 = sphi 0, %s87
    %s90 = sphi 0, %s89
    %s104 = sphi 0, %s90
    %s108 = sphi 0, %s108
    %s110 = sphi 0, %s108
    %s111 = sphi 0, %s110
    %s125 = sphi 0, %s111
    %s131 = sphi 0, %s133
    %s134 = sphi 0, %s131
    %s135 = sphi 0, %s134
    %s151 = sphi 0, %s135
  $region4: #{critic_forward.1} parent=0 // loop_header_branch
    %14 = sbr.rel (%p12) target = $region8
  $region5: #{critic_forward.1} parent=0 // loop_body
    %s16 = ssub.s32 %s11, 1
    %s17 = ssub.s32 %s11, 2
    %s18 = sadd.s32 %s11, 1
    %s19 = ssub.s32 %s11, %s18
    %p20 = scmp.eq.s32.totalorder %s19, 0
    %s22 = sadd.s32 %s21, 1
    %s23 = scalar_select %p20, %s21, %s22
    %p26 = pneg %p20
    %p27 = scmp.eq.s32.totalorder %s11, 1
    %p28 = por %p26, %p27
    %p29 = scmp.ne.s32.totalorder %s21, %s24
    %p30 = scmp.eq.s32.totalorder %s11, 0
    %p31 = por %p29, %p30
    %p32 = scmp.ne.s32.totalorder %s21, %s24
    %p33 = scmp.eq.s32.totalorder %s16, 1
    %p34 = por %p32, %p33
    %p35 = scmp.ne.s32.totalorder %s24, %s25
    %p36 = scmp.eq.s32.totalorder %s16, 0
    %p37 = por %p35, %p36
    %p38 = scmp.ne.s32.totalorder %s24, %s25
    %p39 = scmp.eq.s32.totalorder %s17, 1
    %p40 = por %p38, %p39
    %p42 = scmp.ne.s32.totalorder %s25, %s41
    %p43 = scmp.eq.s32.totalorder %s17, 0
    %p44 = por %p42, %p43
    %s46 = sadd.s32 %s45, 1
    %p49 = scmp.eq.s32.totalorder %s11, 1
    %p50 = scmp.ne.s32.totalorder %s45, %s47
    %p51 = scmp.eq.s32.totalorder %s11, 0
    %p52 = por %p50, %p51
    %p53 = scmp.ne.s32.totalorder %s45, %s47
    %p54 = scmp.eq.s32.totalorder %s16, 1
    %p55 = por %p53, %p54
    %p56 = scmp.ne.s32.totalorder %s47, %s48
    %p57 = scmp.eq.s32.totalorder %s16, 0
    %p58 = por %p56, %p57
    %p59 = scmp.ne.s32.totalorder %s47, %s48
    %p60 = scmp.eq.s32.totalorder %s17, 1
    %p61 = por %p59, %p60
    %p63 = scmp.ne.s32.totalorder %s48, %s62
    %p64 = scmp.eq.s32.totalorder %s17, 0
    %p65 = por %p63, %p64
    %s67 = sadd.s32 %s66, 1
    %p70 = scmp.eq.s32.totalorder %s11, 1
    %p71 = scmp.ne.s32.totalorder %s66, %s68
    %p72 = scmp.eq.s32.totalorder %s11, 0
    %p73 = por %p71, %p72
    %p74 = scmp.ne.s32.totalorder %s66, %s68
    %p75 = scmp.eq.s32.totalorder %s16, 1
    %p76 = por %p74, %p75
    %p77 = scmp.ne.s32.totalorder %s68, %s69
    %p78 = scmp.eq.s32.totalorder %s16, 0
    %p79 = por %p77, %p78
    %p80 = scmp.ne.s32.totalorder %s68, %s69
    %p81 = scmp.eq.s32.totalorder %s17, 1
    %p82 = por %p80, %p81
    %p84 = scmp.ne.s32.totalorder %s69, %s83
    %p85 = scmp.eq.s32.totalorder %s17, 0
    %p86 = por %p84, %p85
    %s88 = sadd.s32 %s87, 1
    %p91 = scmp.eq.s32.totalorder %s11, 1
    %p92 = scmp.ne.s32.totalorder %s87, %s89
    %p93 = scmp.eq.s32.totalorder %s11, 0
    %p94 = por %p92, %p93
    %p95 = scmp.ne.s32.totalorder %s87, %s89
    %p96 = scmp.eq.s32.totalorder %s16, 1
    %p97 = por %p95, %p96
    %p98 = scmp.ne.s32.totalorder %s89, %s90
    %p99 = scmp.eq.s32.totalorder %s16, 0
    %p100 = por %p98, %p99
    %p101 = scmp.ne.s32.totalorder %s89, %s90
    %p102 = scmp.eq.s32.totalorder %s17, 1
    %p103 = por %p101, %p102
    %p105 = scmp.ne.s32.totalorder %s90, %s104
    %p106 = scmp.eq.s32.totalorder %s17, 0
    %p107 = por %p105, %p106
    %s109 = sadd.s32 %s108, 1
    %p112 = scmp.eq.s32.totalorder %s11, 1
    %p113 = scmp.ne.s32.totalorder %s108, %s110
    %p114 = scmp.eq.s32.totalorder %s11, 0
    %p115 = por %p113, %p114
    %p116 = scmp.ne.s32.totalorder %s108, %s110
    %p117 = scmp.eq.s32.totalorder %s16, 1
    %p118 = por %p116, %p117
    %p119 = scmp.ne.s32.totalorder %s110, %s111
    %p120 = scmp.eq.s32.totalorder %s16, 0
    %p121 = por %p119, %p120
    %p122 = scmp.ne.s32.totalorder %s110, %s111
    %p123 = scmp.eq.s32.totalorder %s17, 1
    %p124 = por %p122, %p123
    %p126 = scmp.ne.s32.totalorder %s111, %s125
    %p127 = scmp.eq.s32.totalorder %s17, 0
    %p128 = por %p126, %p127
    %s129 = ssub.s32 %s11, %s18
    %p130 = scmp.eq.s32.totalorder %s129, 0
    %s132 = sadd.s32 %s131, 1
    %s133 = scalar_select %p130, %s131, %s132
    %p136 = pneg %p130
    %p137 = scmp.eq.s32.totalorder %s11, 1
    %p138 = por %p136, %p137
    %p139 = scmp.ne.s32.totalorder %s131, %s134
    %p140 = scmp.eq.s32.totalorder %s11, 0
    %p141 = por %p139, %p140
    %p142 = scmp.ne.s32.totalorder %s131, %s134
    %p143 = scmp.eq.s32.totalorder %s16, 1
    %p144 = por %p142, %p143
    %p145 = scmp.ne.s32.totalorder %s134, %s135
    %p146 = scmp.eq.s32.totalorder %s16, 0
    %p147 = por %p145, %p146
    %p148 = scmp.ne.s32.totalorder %s134, %s135
    %p149 = scmp.eq.s32.totalorder %s17, 1
    %p150 = por %p148, %p149
    %p152 = scmp.ne.s32.totalorder %s135, %s151
    %p153 = scmp.eq.s32.totalorder %s17, 0
    %p154 = por %p152, %p153
    %p155 = scmp.le.s32.totalorder 1, %s11
    %p156 = scmp.lt.s32.totalorder %s11, 3
    %p157 = pnand %p155, %p156
    %p158 = pneg %p157
    // Predicated region
    $region9: #{critic_forward.1} parent=5 // pred_check
      _
    $region10: #{critic_forward.1} parent=5 // pred_check_branch
      %160 = sbr.rel (%p157) target = $region12
    $region11: #{critic_forward.1} parent=5 // pred_region
      %s161 = ssub.s32 %s11, 1
      // Predicated region
      $region13: #{critic_forward.1} parent=11 // pred_check
        %p162 = pneg %p58
      $region14: #{critic_forward.1} parent=11 // pred_check_branch
        %164 = sbr.rel (%p162) target = $region16
      $region15: #{critic_forward.1} parent=11 // pred_region
        _
      $region16: #{critic_forward.1} parent=11 // pred_fallthru
        _
      // Predicated region
      $region17: #{critic_forward.1} parent=11 // pred_check
        %p165 = pneg %p79
      $region18: #{critic_forward.1} parent=11 // pred_check_branch
        %167 = sbr.rel (%p165) target = $region20
      $region19: #{critic_forward.1} parent=11 // pred_region
        _
      $region20: #{critic_forward.1} parent=11 // pred_fallthru
        _
      // Predicated region
      $region21: #{critic_forward.1} parent=11 // pred_check
        %p168 = pneg %p100
      $region22: #{critic_forward.1} parent=11 // pred_check_branch
        %170 = sbr.rel (%p168) target = $region24
      $region23: #{critic_forward.1} parent=11 // pred_region
        _
      $region24: #{critic_forward.1} parent=11 // pred_fallthru
        _
      // Predicated region
      $region25: #{critic_forward.1} parent=11 // pred_check
        %p171 = pneg %p121
      $region26: #{critic_forward.1} parent=11 // pred_check_branch
        %173 = sbr.rel (%p171) target = $region28
      $region27: #{critic_forward.1} parent=11 // pred_region
        _
      $region28: #{critic_forward.1} parent=11 // pred_fallthru
        _
    $region12: #{critic_forward.1} parent=5 // pred_fallthru
      _
    %p174 = scmp.lt.s32.totalorder %s11, 2
    // Predicated region
    $region29: #{critic_forward.1} parent=5 // pred_check
      %p175 = pneg %p174
    $region30: #{critic_forward.1} parent=5 // pred_check_branch
      %177 = sbr.rel (%p175) target = $region32
    $region31: #{critic_forward.1} parent=5 // pred_region
      // Predicated region
      $region33: #{critic_forward.1} parent=31 // pred_check
        %p178 = pneg %p31
      $region34: #{critic_forward.1} parent=31 // pred_check_branch
        %180 = sbr.rel (%p178) target = $region36
      $region35: #{critic_forward.1} parent=31 // pred_region
        %s181 = smul.u32 32, %s11
        %p182 = scmp.lt.s32.totalorder %s181, 63
        %s183 = scalar_select %p182, %s181, 63
        %s184 = smul.addr %s183, 4
        %s185 = scalar_lea.vmem %s0, %s184
        %s186 = smul.u32 32, %s11
      $region36: #{critic_forward.1} parent=31 // pred_fallthru
        _
    $region32: #{critic_forward.1} parent=5 // pred_fallthru
      _
    %p187 = scmp.le.s32.totalorder 1, %s11
    %p188 = scmp.lt.s32.totalorder %s11, 3
    %p189 = pnand %p187, %p188
    %p190 = pneg %p189
    // Predicated region
    $region37: #{critic_forward.1} parent=5 // pred_check
      _
    $region38: #{critic_forward.1} parent=5 // pred_check_branch
      %192 = sbr.rel (%p189) target = $region40
    $region39: #{critic_forward.1} parent=5 // pred_region
      %s193 = ssub.s32 %s11, 1
      %s194 = smul.u32 32, %s16
      %p195 = scmp.lt.s32.totalorder %s194, 63
      %s196 = scalar_select %p195, %s194, 63
      %s197 = smul.addr %s196, 4
      %s198 = scalar_lea.vmem %s0, %s197
      %p199 = pneg %p37
      %p200 = pneg %p34
      %p201 = pneg %p58
      %p202 = pneg %p55
      %p203 = pneg %p79
      %p204 = pneg %p76
      %p205 = pneg %p100
      %p206 = pneg %p97
      %p207 = pneg %p121
      %p208 = pneg %p118
      %p209 = pneg %p147
      %p210 = pneg %p144
      %s211 = smul.u32 32, %s16
      %p212 = scmp.lt.s32.totalorder %s211, 63
      %s213 = scalar_select %p212, %s211, 63
      %s214 = smul.addr %s213, 8
      %s215 = scalar_lea.vmem %s5, %s214
      %s216 = smul.u32 32, %s16
      %p217 = scmp.lt.s32.totalorder %s216, 63
      %s218 = scalar_select %p217, %s216, 63
      %s219 = smul.addr %s218, 4
      %s220 = scalar_lea.vmem %s0, %s219
      %s221 = smul.u32 32, %s16
      %s222 = smul.u32 32, %s16
      %p223 = scmp.lt.s32.totalorder %s222, 63
      %s224 = scalar_select %p223, %s222, 63
      %s225 = smul.addr %s224, 8
      %s226 = scalar_lea.vmem %s5, %s225
      %s227 = smul.u32 32, %s16
      %v229 = vld [vmem:[%s220] sm:$0xf]
      %v230 = vld [vmem:[%s220 + $0x4] sm:$0xf]
      %v231 = vld [vmem:[%s220 + $0x8] sm:$0xf]
      %v232 = vld [vmem:[%s220 + $0xc] sm:$0xf]
      %v233 = vld [vmem:[%s220 + $0x10] sm:$0xf]
      %v234 = vld [vmem:[%s220 + $0x14] sm:$0xf]
      %v235 = vld [vmem:[%s220 + $0x18] sm:$0xf]
      %v236 = vld [vmem:[%s220 + $0x1c] sm:$0xf]
      %v237 = vld [vmem:[%s220 + $0x20] sm:$0xf]
      %v238 = vld [vmem:[%s220 + $0x24] sm:$0xf]
      %v239 = vld [vmem:[%s220 + $0x28] sm:$0xf]
      %v240 = vld [vmem:[%s220 + $0x2c] sm:$0xf]
      %v241 = vld [vmem:[%s220 + $0x30] sm:$0xf]
      %v242 = vld [vmem:[%s220 + $0x34] sm:$0xf]
      %v243 = vld [vmem:[%s220 + $0x38] sm:$0xf]
      %v244 = vld [vmem:[%s220 + $0x3c] sm:$0xf]
      %v245 = vld [vmem:[%s220 + $0x40] sm:$0xf]
      %v246 = vld [vmem:[%s220 + $0x44] sm:$0xf]
      %v247 = vld [vmem:[%s220 + $0x48] sm:$0xf]
      %v248 = vld [vmem:[%s220 + $0x4c] sm:$0xf]
      %v249 = vld [vmem:[%s220 + $0x50] sm:$0xf]
      %v250 = vld [vmem:[%s220 + $0x54] sm:$0xf]
      %v251 = vld [vmem:[%s220 + $0x58] sm:$0xf]
      %v252 = vld [vmem:[%s220 + $0x5c] sm:$0xf]
      %v253 = vld [vmem:[%s220 + $0x60] sm:$0xf]
      %v254 = vld [vmem:[%s220 + $0x64] sm:$0xf]
      %v255 = vld [vmem:[%s220 + $0x68] sm:$0xf]
      %v256 = vld [vmem:[%s220 + $0x6c] sm:$0xf]
      %v257 = vld [vmem:[%s220 + $0x70] sm:$0xf]
      %v258 = vld [vmem:[%s220 + $0x74] sm:$0xf]
      %v259 = vld [vmem:[%s220 + $0x78] sm:$0xf]
      %v260 = vld [vmem:[%s220 + $0x7c] sm:$0xf]
      %v261 = vld [vmem:[%s1] sm:$0xf]
      %v262 = vld [vmem:[%s1 + $0x4] sm:$0xf]
      %v263 = vld [vmem:[%s1 + $0x8] sm:$0xf]
      %v264 = vld [vmem:[%s1 + $0xc] sm:$0xf]
      %v265 = vld [vmem:[%s4] sm:$0x1]
      %v266 = vlaneseq
      %v267 = vshrl.u32 %v266, 7
      %v268 = vsub.s32 0, %v267
      %v269 = vrot.slane %v265, %v268
      %v302 = vunpack.c.l.b16 %v229
      %v303 = vunpack.c.l.b16 %v230
      %v304 = vunpack.c.l.b16 %v231
      %v305 = vunpack.c.l.b16 %v232
      %v306 = vunpack.c.l.b16 %v233
      %v307 = vunpack.c.l.b16 %v234
      %v308 = vunpack.c.l.b16 %v235
      %v309 = vunpack.c.l.b16 %v236
      %v310 = vunpack.c.l.b16 %v237
      %v311 = vunpack.c.l.b16 %v238
      %v312 = vunpack.c.l.b16 %v239
      %v313 = vunpack.c.l.b16 %v240
      %v314 = vunpack.c.l.b16 %v241
      %v315 = vunpack.c.l.b16 %v242
      %v316 = vunpack.c.l.b16 %v243
      %v317 = vunpack.c.l.b16 %v244
      %v318 = vunpack.c.l.b16 %v245
      %v319 = vunpack.c.l.b16 %v246
      %v320 = vunpack.c.l.b16 %v247
      %v321 = vunpack.c.l.b16 %v248
      %v322 = vunpack.c.l.b16 %v249
      %v323 = vunpack.c.l.b16 %v250
      %v324 = vunpack.c.l.b16 %v251
      %v325 = vunpack.c.l.b16 %v252
      %v326 = vunpack.c.l.b16 %v253
      %v327 = vunpack.c.l.b16 %v254
      %v328 = vunpack.c.l.b16 %v255
      %v329 = vunpack.c.l.b16 %v256
      %v330 = vunpack.c.l.b16 %v257
      %v331 = vunpack.c.l.b16 %v258
      %v332 = vunpack.c.l.b16 %v259
      %v333 = vunpack.c.l.b16 %v260
      %v334 = vpack.c.b16 %v303, %v302
      %v335 = vpack.c.b16 %v305, %v304
      %v336 = vpack.c.b16 %v307, %v306
      %v337 = vpack.c.b16 %v309, %v308
      %v338 = vpack.c.b16 %v311, %v310
      %v339 = vpack.c.b16 %v313, %v312
      %v340 = vpack.c.b16 %v315, %v314
      %v341 = vpack.c.b16 %v317, %v316
      %v342 = vpack.c.b16 %v319, %v318
      %v343 = vpack.c.b16 %v321, %v320
      %v344 = vpack.c.b16 %v323, %v322
      %v345 = vpack.c.b16 %v325, %v324
      %v346 = vpack.c.b16 %v327, %v326
      %v347 = vpack.c.b16 %v329, %v328
      %v348 = vpack.c.b16 %v331, %v330
      %v349 = vpack.c.b16 %v333, %v332
      %v354 = vunpack.c.l.b16 %v261
      %v355 = vunpack.c.l.b16 %v262
      %v356 = vunpack.c.l.b16 %v263
      %v357 = vunpack.c.l.b16 %v264
      %v358 = vpack.c.b16 %v355, %v354
      %v359 = vpack.c.b16 %v357, %v356
      %vm362 = vcmask 261120
      %v364 = vsel %vm362, %v334, 0
      %v367 = vsel %vm362, %v335, 0
      %v370 = vsel %vm362, %v336, 0
      %v373 = vsel %vm362, %v337, 0
      %v376 = vsel %vm362, %v338, 0
      %v379 = vsel %vm362, %v339, 0
      %v382 = vsel %vm362, %v340, 0
      %v385 = vsel %vm362, %v341, 0
      %v388 = vsel %vm362, %v342, 0
      %v391 = vsel %vm362, %v343, 0
      %v394 = vsel %vm362, %v344, 0
      %v397 = vsel %vm362, %v345, 0
      %v400 = vsel %vm362, %v346, 0
      %v403 = vsel %vm362, %v347, 0
      %v406 = vsel %vm362, %v348, 0
      %v409 = vsel %vm362, %v349, 0
      %411 = vmatprep.subr.bf16.mxu0 0
      %412 = vmatpush1.bf16.msra.mxu0 %v358
      %413 = vmatprep.subr.bf16.mxu0 0
      %414 = vmatpush1.bf16.msra.mxu0 %v359
      %415 = vmatprep.subr.bf16.mxu0 0
      %416 = vmatpush1.bf16.msra.mxu0 0
      %417 = vmatprep.subr.bf16.mxu0 0
      %418 = vmatpush1.bf16.msra.mxu0 0
      %419 = vmatprep.subr.bf16.mxu0 0
      %420 = vmatpush1.bf16.msra.mxu0 0
      %421 = vmatprep.subr.bf16.mxu0 0
      %422 = vmatpush1.bf16.msra.mxu0 0
      %423 = vmatprep.subr.bf16.mxu0 0
      %424 = vmatpush1.bf16.msra.mxu0 0
      %425 = vmatprep.subr.bf16.mxu0 0
      %426 = vmatpush1.bf16.msra.mxu0 0
      %427 = vmatprep.subr.bf16.mxu0 0
      %428 = vmatpush1.bf16.msra.mxu0 0
      %429 = vmatprep.subr.bf16.mxu0 0
      %430 = vmatpush1.bf16.msra.mxu0 0
      %431 = vmatprep.subr.bf16.mxu0 0
      %432 = vmatpush1.bf16.msra.mxu0 0
      %433 = vmatprep.subr.bf16.mxu0 0
      %434 = vmatpush1.bf16.msra.mxu0 0
      %435 = vmatprep.subr.bf16.mxu0 0
      %436 = vmatpush1.bf16.msra.mxu0 0
      %437 = vmatprep.subr.bf16.mxu0 0
      %438 = vmatpush1.bf16.msra.mxu0 0
      %439 = vmatprep.subr.bf16.mxu0 0
      %440 = vmatpush1.bf16.msra.mxu0 0
      %441 = vmatprep.subr.bf16.mxu0 0
      %442 = vmatpush1.bf16.msra.mxu0 0
      %443 = vmatprep.mubr.bf16.mxu0 0
      %444 = vmatmul.mubr.bf16.gmra.mrb[0].mxu0 %v364
      %v445 = vpop.f32.mrb[0].mxu0
      %v446 = vadd.f32 %v269, %v445
      %v447 = vpop.f32.mrb[0].mxu0
      %v448 = vpop.f32.mrb[0].mxu0
      %v449 = vadd.f32 %v269, %v448
      %v450 = vpop.f32.mrb[0].mxu0
      %451 = vmatprep.mubr.bf16.mxu0 0
      %452 = vmatmul.mubr.bf16.gmra.mrb[0].mxu0 %v367
      %v453 = vpop.f32.mrb[0].mxu0
      %v454 = vadd.f32 %v269, %v453
      %v455 = vpop.f32.mrb[0].mxu0
      %v456 = vpop.f32.mrb[0].mxu0
      %v457 = vadd.f32 %v269, %v456
      %v458 = vpop.f32.mrb[0].mxu0
      %459 = vmatprep.mubr.bf16.mxu0 0
      %460 = vmatmul.mubr.bf16.gmra.mrb[0].mxu0 %v370
      %v461 = vpop.f32.mrb[0].mxu0
      %v462 = vadd.f32 %v269, %v461
      %v463 = vpop.f32.mrb[0].mxu0
      %v464 = vpop.f32.mrb[0].mxu0
      %v465 = vadd.f32 %v269, %v464
      %v466 = vpop.f32.mrb[0].mxu0
      %467 = vmatprep.mubr.bf16.mxu0 0
      %468 = vmatmul.mubr.bf16.gmra.mrb[0].mxu0 %v373
      %v469 = vpop.f32.mrb[0].mxu0
      %v470 = vadd.f32 %v269, %v469
      %v471 = vpop.f32.mrb[0].mxu0
      %v472 = vpop.f32.mrb[0].mxu0
      %v473 = vadd.f32 %v269, %v472
      %v474 = vpop.f32.mrb[0].mxu0
      %475 = vmatprep.mubr.bf16.mxu0 0
      %476 = vmatmul.mubr.bf16.gmra.mrb[0].mxu0 %v376
      %v477 = vpop.f32.mrb[0].mxu0
      %v478 = vadd.f32 %v269, %v477
      %v479 = vpop.f32.mrb[0].mxu0
      %v480 = vpop.f32.mrb[0].mxu0
      %v481 = vadd.f32 %v269, %v480
      %v482 = vpop.f32.mrb[0].mxu0
      %483 = vmatprep.mubr.bf16.mxu0 0
      %484 = vmatmul.mubr.bf16.gmra.mrb[0].mxu0 %v379
      %v485 = vpop.f32.mrb[0].mxu0
      %v486 = vadd.f32 %v269, %v485
      %v487 = vpop.f32.mrb[0].mxu0
      %v488 = vpop.f32.mrb[0].mxu0
      %v489 = vadd.f32 %v269, %v488
      %v490 = vpop.f32.mrb[0].mxu0
      %491 = vmatprep.mubr.bf16.mxu0 0
      %492 = vmatmul.mubr.bf16.gmra.mrb[0].mxu0 %v382
      %v493 = vpop.f32.mrb[0].mxu0
      %v494 = vadd.f32 %v269, %v493
      %v495 = vpop.f32.mrb[0].mxu0
      %v496 = vpop.f32.mrb[0].mxu0
      %v497 = vadd.f32 %v269, %v496
      %v498 = vpop.f32.mrb[0].mxu0
      %499 = vmatprep.mubr.bf16.mxu0 0
      %500 = vmatmul.mubr.bf16.gmra.mrb[0].mxu0 %v385
      %v501 = vpop.f32.mrb[0].mxu0
      %v502 = vadd.f32 %v269, %v501
      %v503 = vpop.f32.mrb[0].mxu0
      %v504 = vpop.f32.mrb[0].mxu0
      %v505 = vadd.f32 %v269, %v504
      %v506 = vpop.f32.mrb[0].mxu0
      %507 = vmatprep.mubr.bf16.mxu0 0
      %508 = vmatmul.mubr.bf16.gmra.mrb[0].mxu0 %v388
      %v509 = vpop.f32.mrb[0].mxu0
      %v510 = vadd.f32 %v269, %v509
      %v511 = vpop.f32.mrb[0].mxu0
      %v512 = vpop.f32.mrb[0].mxu0
      %v513 = vadd.f32 %v269, %v512
      %v514 = vpop.f32.mrb[0].mxu0
      %515 = vmatprep.mubr.bf16.mxu0 0
      %516 = vmatmul.mubr.bf16.gmra.mrb[0].mxu0 %v391
      %v517 = vpop.f32.mrb[0].mxu0
      %v518 = vadd.f32 %v269, %v517
      %v519 = vpop.f32.mrb[0].mxu0
      %v520 = vpop.f32.mrb[0].mxu0
      %v521 = vadd.f32 %v269, %v520
      %v522 = vpop.f32.mrb[0].mxu0
      %523 = vmatprep.mubr.bf16.mxu0 0
      %524 = vmatmul.mubr.bf16.gmra.mrb[0].mxu0 %v394
      %v525 = vpop.f32.mrb[0].mxu0
      %v526 = vadd.f32 %v269, %v525
      %v527 = vpop.f32.mrb[0].mxu0
      %v528 = vpop.f32.mrb[0].mxu0
      %v529 = vadd.f32 %v269, %v528
      %v530 = vpop.f32.mrb[0].mxu0
      %531 = vmatprep.mubr.bf16.mxu0 0
      %532 = vmatmul.mubr.bf16.gmra.mrb[0].mxu0 %v397
      %v533 = vpop.f32.mrb[0].mxu0
      %v534 = vadd.f32 %v269, %v533
      %v535 = vpop.f32.mrb[0].mxu0
      %v536 = vpop.f32.mrb[0].mxu0
      %v537 = vadd.f32 %v269, %v536
      %v538 = vpop.f32.mrb[0].mxu0
      %539 = vmatprep.mubr.bf16.mxu0 0
      %540 = vmatmul.mubr.bf16.gmra.mrb[0].mxu0 %v400
      %v541 = vpop.f32.mrb[0].mxu0
      %v542 = vadd.f32 %v269, %v541
      %v543 = vpop.f32.mrb[0].mxu0
      %v544 = vpop.f32.mrb[0].mxu0
      %v545 = vadd.f32 %v269, %v544
      %v546 = vpop.f32.mrb[0].mxu0
      %547 = vmatprep.mubr.bf16.mxu0 0
      %548 = vmatmul.mubr.bf16.gmra.mrb[0].mxu0 %v403
      %v549 = vpop.f32.mrb[0].mxu0
      %v550 = vadd.f32 %v269, %v549
      %v551 = vpop.f32.mrb[0].mxu0
      %v552 = vpop.f32.mrb[0].mxu0
      %v553 = vadd.f32 %v269, %v552
      %v554 = vpop.f32.mrb[0].mxu0
      %555 = vmatprep.mubr.bf16.mxu0 0
      %556 = vmatmul.mubr.bf16.gmra.mrb[0].mxu0 %v406
      %v557 = vpop.f32.mrb[0].mxu0
      %v558 = vadd.f32 %v269, %v557
      %v559 = vpop.f32.mrb[0].mxu0
      %v560 = vpop.f32.mrb[0].mxu0
      %v561 = vadd.f32 %v269, %v560
      %v562 = vpop.f32.mrb[0].mxu0
      %563 = vmatprep.mubr.bf16.mxu0 0
      %564 = vmatmul.mubr.bf16.gmra.mrb[0].mxu0 %v409
      %v565 = vpop.f32.mrb[0].mxu0
      %v566 = vadd.f32 %v269, %v565
      %v567 = vpop.f32.mrb[0].mxu0
      %v568 = vpop.f32.mrb[0].mxu0
      %v569 = vadd.f32 %v269, %v568
      %v570 = vpop.f32.mrb[0].mxu0
      %571 = vdwg.mxu0
      %v572 = vmax.f32 %v446, 0.0
      %v573 = vmax.f32 %v449, 0.0
      %v574 = vmax.f32 %v454, 0.0
      %v575 = vmax.f32 %v457, 0.0
      %v576 = vmax.f32 %v462, 0.0
      %v577 = vmax.f32 %v465, 0.0
      %v578 = vmax.f32 %v470, 0.0
      %v579 = vmax.f32 %v473, 0.0
      %v580 = vmax.f32 %v478, 0.0
      %v581 = vmax.f32 %v481, 0.0
      %v582 = vmax.f32 %v486, 0.0
      %v583 = vmax.f32 %v489, 0.0
      %v584 = vmax.f32 %v494, 0.0
      %v585 = vmax.f32 %v497, 0.0
      %v586 = vmax.f32 %v502, 0.0
      %v587 = vmax.f32 %v505, 0.0
      %v588 = vmax.f32 %v510, 0.0
      %v589 = vmax.f32 %v513, 0.0
      %v590 = vmax.f32 %v518, 0.0
      %v591 = vmax.f32 %v521, 0.0
      %v592 = vmax.f32 %v526, 0.0
      %v593 = vmax.f32 %v529, 0.0
      %v594 = vmax.f32 %v534, 0.0
      %v595 = vmax.f32 %v537, 0.0
      %v596 = vmax.f32 %v542, 0.0
      %v597 = vmax.f32 %v545, 0.0
      %v598 = vmax.f32 %v550, 0.0
      %v599 = vmax.f32 %v553, 0.0
      %v600 = vmax.f32 %v558, 0.0
      %v601 = vmax.f32 %v561, 0.0
      %v602 = vmax.f32 %v566, 0.0
      %v603 = vmax.f32 %v569, 0.0
      %v604 = vpack.c.bf16 %v573, %v572
      %v605 = vpack.c.bf16 %v575, %v574
      %v606 = vpack.c.bf16 %v577, %v576
      %v607 = vpack.c.bf16 %v579, %v578
      %v608 = vpack.c.bf16 %v581, %v580
      %v609 = vpack.c.bf16 %v583, %v582
      %v610 = vpack.c.bf16 %v585, %v584
      %v611 = vpack.c.bf16 %v587, %v586
      %v612 = vpack.c.bf16 %v589, %v588
      %v613 = vpack.c.bf16 %v591, %v590
      %v614 = vpack.c.bf16 %v593, %v592
      %v615 = vpack.c.bf16 %v595, %v594
      %v616 = vpack.c.bf16 %v597, %v596
      %v617 = vpack.c.bf16 %v599, %v598
      %v618 = vpack.c.bf16 %v601, %v600
      %v619 = vpack.c.bf16 %v603, %v602
      %v620 = vld [vmem:[%s2] sm:$0xf]
      %v621 = vld [vmem:[%s2 + $0x4] sm:$0xf]
      %v622 = vld [vmem:[%s2 + $0x8] sm:$0xf]
      %v623 = vld [vmem:[%s2 + $0xc] sm:$0xf]
      %v624 = vld [vmem:[%s2 + $0x10] sm:$0xf]
      %v625 = vld [vmem:[%s2 + $0x14] sm:$0xf]
      %v626 = vld [vmem:[%s2 + $0x18] sm:$0xf]
      %v627 = vld [vmem:[%s2 + $0x1c] sm:$0xf]
      %v628 = vld [vmem:[%s2 + $0x20] sm:$0xf]
      %v629 = vld [vmem:[%s2 + $0x24] sm:$0xf]
      %v630 = vld [vmem:[%s2 + $0x28] sm:$0xf]
      %v631 = vld [vmem:[%s2 + $0x2c] sm:$0xf]
      %v632 = vld [vmem:[%s2 + $0x30] sm:$0xf]
      %v633 = vld [vmem:[%s2 + $0x34] sm:$0xf]
      %v634 = vld [vmem:[%s2 + $0x38] sm:$0xf]
      %v635 = vld [vmem:[%s2 + $0x3c] sm:$0xf]
      %v636 = vld [vmem:[%s4 + $0x1] sm:$0x1]
      %v637 = vlaneseq
      %v638 = vshrl.u32 %v637, 7
      %v639 = vsub.s32 0, %v638
      %v640 = vrot.slane %v636, %v639
      %v657 = vunpack.c.l.b16 %v620
      %v658 = vunpack.c.l.b16 %v621
      %v659 = vunpack.c.l.b16 %v622
      %v660 = vunpack.c.l.b16 %v623
      %v661 = vunpack.c.l.b16 %v624
      %v662 = vunpack.c.l.b16 %v625
      %v663 = vunpack.c.l.b16 %v626
      %v664 = vunpack.c.l.b16 %v627
      %v665 = vunpack.c.l.b16 %v628
      %v666 = vunpack.c.l.b16 %v629
      %v667 = vunpack.c.l.b16 %v630
      %v668 = vunpack.c.l.b16 %v631
      %v669 = vunpack.c.l.b16 %v632
      %v670 = vunpack.c.l.b16 %v633
      %v671 = vunpack.c.l.b16 %v634
      %v672 = vunpack.c.l.b16 %v635
      %v673 = vpack.c.b16 %v658, %v657
      %v674 = vpack.c.b16 %v660, %v659
      %v675 = vpack.c.b16 %v662, %v661
      %v676 = vpack.c.b16 %v664, %v663
      %v677 = vpack.c.b16 %v666, %v665
      %v678 = vpack.c.b16 %v668, %v667
      %v679 = vpack.c.b16 %v670, %v669
      %v680 = vpack.c.b16 %v672, %v671
      %689 = vmatprep.subr.bf16.mxu0 0
      %690 = vmatpush1.bf16.msra.mxu0 %v673
      %691 = vmatprep.subr.bf16.mxu0 0
      %692 = vmatpush1.bf16.msra.mxu0 %v674
      %693 = vmatprep.subr.bf16.mxu0 0
      %694 = vmatpush1.bf16.msra.mxu0 %v675
      %695 = vmatprep.subr.bf16.mxu0 0
      %696 = vmatpush1.bf16.msra.mxu0 %v676
      %697 = vmatprep.subr.bf16.mxu0 0
      %698 = vmatpush1.bf16.msra.mxu0 %v677
      %699 = vmatprep.subr.bf16.mxu0 0
      %700 = vmatpush1.bf16.msra.mxu0 %v678
      %701 = vmatprep.subr.bf16.mxu0 0
      %702 = vmatpush1.bf16.msra.mxu0 %v679
      %703 = vmatprep.subr.bf16.mxu0 0
      %704 = vmatpush1.bf16.msra.mxu0 %v680
      %705 = vmatprep.subr.bf16.mxu0 0
      %706 = vmatpush1.bf16.msra.mxu0 0
      %707 = vmatprep.subr.bf16.mxu0 0
      %708 = vmatpush1.bf16.msra.mxu0 0
      %709 = vmatprep.subr.bf16.mxu0 0
      %710 = vmatpush1.bf16.msra.mxu0 0
      %711 = vmatprep.subr.bf16.mxu0 0
      %712 = vmatpush1.bf16.msra.mxu0 0
      %713 = vmatprep.subr.bf16.mxu0 0
      %714 = vmatpush1.bf16.msra.mxu0 0
      %715 = vmatprep.subr.bf16.mxu0 0
      %716 = vmatpush1.bf16.msra.mxu0 0
      %717 = vmatprep.subr.bf16.mxu0 0
      %718 = vmatpush1.bf16.msra.mxu0 0
      %719 = vmatprep.subr.bf16.mxu0 0
      %720 = vmatpush1.bf16.msra.mxu0 0
      %721 = vmatprep.mubr.bf16.mxu0 0
      %722 = vmatmul.mubr.bf16.gmra.mrb[0].mxu0 %v604
      %v723 = vpop.f32.mrb[0].mxu0
      %v724 = vadd.f32 %v640, %v723
      %v725 = vpop.f32.mrb[0].mxu0
      %v726 = vpop.f32.mrb[0].mxu0
      %v727 = vadd.f32 %v640, %v726
      %v728 = vpop.f32.mrb[0].mxu0
      %729 = vmatprep.mubr.bf16.mxu0 0
      %730 = vmatmul.mubr.bf16.gmra.mrb[0].mxu0 %v605
      %v731 = vpop.f32.mrb[0].mxu0
      %v732 = vadd.f32 %v640, %v731
      %v733 = vpop.f32.mrb[0].mxu0
      %v734 = vpop.f32.mrb[0].mxu0
      %v735 = vadd.f32 %v640, %v734
      %v736 = vpop.f32.mrb[0].mxu0
      %737 = vmatprep.mubr.bf16.mxu0 0
      %738 = vmatmul.mubr.bf16.gmra.mrb[0].mxu0 %v606
      %v739 = vpop.f32.mrb[0].mxu0
      %v740 = vadd.f32 %v640, %v739
      %v741 = vpop.f32.mrb[0].mxu0
      %v742 = vpop.f32.mrb[0].mxu0
      %v743 = vadd.f32 %v640, %v742
      %v744 = vpop.f32.mrb[0].mxu0
      %745 = vmatprep.mubr.bf16.mxu0 0
      %746 = vmatmul.mubr.bf16.gmra.mrb[0].mxu0 %v607
      %v747 = vpop.f32.mrb[0].mxu0
      %v748 = vadd.f32 %v640, %v747
      %v749 = vpop.f32.mrb[0].mxu0
      %v750 = vpop.f32.mrb[0].mxu0
      %v751 = vadd.f32 %v640, %v750
      %v752 = vpop.f32.mrb[0].mxu0
      %753 = vmatprep.mubr.bf16.mxu0 0
      %754 = vmatmul.mubr.bf16.gmra.mrb[0].mxu0 %v608
      %v755 = vpop.f32.mrb[0].mxu0
      %v756 = vadd.f32 %v640, %v755
      %v757 = vpop.f32.mrb[0].mxu0
      %v758 = vpop.f32.mrb[0].mxu0
      %v759 = vadd.f32 %v640, %v758
      %v760 = vpop.f32.mrb[0].mxu0
      %761 = vmatprep.mubr.bf16.mxu0 0
      %762 = vmatmul.mubr.bf16.gmra.mrb[0].mxu0 %v609
      %v763 = vpop.f32.mrb[0].mxu0
      %v764 = vadd.f32 %v640, %v763
      %v765 = vpop.f32.mrb[0].mxu0
      %v766 = vpop.f32.mrb[0].mxu0
      %v767 = vadd.f32 %v640, %v766
      %v768 = vpop.f32.mrb[0].mxu0
      %769 = vmatprep.mubr.bf16.mxu0 0
      %770 = vmatmul.mubr.bf16.gmra.mrb[0].mxu0 %v610
      %v771 = vpop.f32.mrb[0].mxu0
      %v772 = vadd.f32 %v640, %v771
      %v773 = vpop.f32.mrb[0].mxu0
      %v774 = vpop.f32.mrb[0].mxu0
      %v775 = vadd.f32 %v640, %v774
      %v776 = vpop.f32.mrb[0].mxu0
      %777 = vmatprep.mubr.bf16.mxu0 0
      %778 = vmatmul.mubr.bf16.gmra.mrb[0].mxu0 %v611
      %v779 = vpop.f32.mrb[0].mxu0
      %v780 = vadd.f32 %v640, %v779
      %v781 = vpop.f32.mrb[0].mxu0
      %v782 = vpop.f32.mrb[0].mxu0
      %v783 = vadd.f32 %v640, %v782
      %v784 = vpop.f32.mrb[0].mxu0
      %785 = vmatprep.mubr.bf16.mxu0 0
      %786 = vmatmul.mubr.bf16.gmra.mrb[0].mxu0 %v612
      %v787 = vpop.f32.mrb[0].mxu0
      %v788 = vadd.f32 %v640, %v787
      %v789 = vpop.f32.mrb[0].mxu0
      %v790 = vpop.f32.mrb[0].mxu0
      %v791 = vadd.f32 %v640, %v790
      %v792 = vpop.f32.mrb[0].mxu0
      %793 = vmatprep.mubr.bf16.mxu0 0
      %794 = vmatmul.mubr.bf16.gmra.mrb[0].mxu0 %v613
      %v795 = vpop.f32.mrb[0].mxu0
      %v796 = vadd.f32 %v640, %v795
      %v797 = vpop.f32.mrb[0].mxu0
      %v798 = vpop.f32.mrb[0].mxu0
      %v799 = vadd.f32 %v640, %v798
      %v800 = vpop.f32.mrb[0].mxu0
      %801 = vmatprep.mubr.bf16.mxu0 0
      %802 = vmatmul.mubr.bf16.gmra.mrb[0].mxu0 %v614
      %v803 = vpop.f32.mrb[0].mxu0
      %v804 = vadd.f32 %v640, %v803
      %v805 = vpop.f32.mrb[0].mxu0
      %v806 = vpop.f32.mrb[0].mxu0
      %v807 = vadd.f32 %v640, %v806
      %v808 = vpop.f32.mrb[0].mxu0
      %809 = vmatprep.mubr.bf16.mxu0 0
      %810 = vmatmul.mubr.bf16.gmra.mrb[0].mxu0 %v615
      %v811 = vpop.f32.mrb[0].mxu0
      %v812 = vadd.f32 %v640, %v811
      %v813 = vpop.f32.mrb[0].mxu0
      %v814 = vpop.f32.mrb[0].mxu0
      %v815 = vadd.f32 %v640, %v814
      %v816 = vpop.f32.mrb[0].mxu0
      %817 = vmatprep.mubr.bf16.mxu0 0
      %818 = vmatmul.mubr.bf16.gmra.mrb[0].mxu0 %v616
      %v819 = vpop.f32.mrb[0].mxu0
      %v820 = vadd.f32 %v640, %v819
      %v821 = vpop.f32.mrb[0].mxu0
      %v822 = vpop.f32.mrb[0].mxu0
      %v823 = vadd.f32 %v640, %v822
      %v824 = vpop.f32.mrb[0].mxu0
      %825 = vmatprep.mubr.bf16.mxu0 0
      %826 = vmatmul.mubr.bf16.gmra.mrb[0].mxu0 %v617
      %v827 = vpop.f32.mrb[0].mxu0
      %v828 = vadd.f32 %v640, %v827
      %v829 = vpop.f32.mrb[0].mxu0
      %v830 = vpop.f32.mrb[0].mxu0
      %v831 = vadd.f32 %v640, %v830
      %v832 = vpop.f32.mrb[0].mxu0
      %833 = vmatprep.mubr.bf16.mxu0 0
      %834 = vmatmul.mubr.bf16.gmra.mrb[0].mxu0 %v618
      %v835 = vpop.f32.mrb[0].mxu0
      %v836 = vadd.f32 %v640, %v835
      %v837 = vpop.f32.mrb[0].mxu0
      %v838 = vpop.f32.mrb[0].mxu0
      %v839 = vadd.f32 %v640, %v838
      %v840 = vpop.f32.mrb[0].mxu0
      %841 = vmatprep.mubr.bf16.mxu0 0
      %842 = vmatmul.mubr.bf16.gmra.mrb[0].mxu0 %v619
      %v843 = vpop.f32.mrb[0].mxu0
      %v844 = vadd.f32 %v640, %v843
      %v845 = vpop.f32.mrb[0].mxu0
      %v846 = vpop.f32.mrb[0].mxu0
      %v847 = vadd.f32 %v640, %v846
      %v848 = vpop.f32.mrb[0].mxu0
      %849 = vdwg.mxu0
      %v850 = vmax.f32 %v724, 0.0
      %v851 = vmax.f32 %v727, 0.0
      %v852 = vmax.f32 %v732, 0.0
      %v853 = vmax.f32 %v735, 0.0
      %v854 = vmax.f32 %v740, 0.0
      %v855 = vmax.f32 %v743, 0.0
      %v856 = vmax.f32 %v748, 0.0
      %v857 = vmax.f32 %v751, 0.0
      %v858 = vmax.f32 %v756, 0.0
      %v859 = vmax.f32 %v759, 0.0
      %v860 = vmax.f32 %v764, 0.0
      %v861 = vmax.f32 %v767, 0.0
      %v862 = vmax.f32 %v772, 0.0
      %v863 = vmax.f32 %v775, 0.0
      %v864 = vmax.f32 %v780, 0.0
      %v865 = vmax.f32 %v783, 0.0
      %v866 = vmax.f32 %v788, 0.0
      %v867 = vmax.f32 %v791, 0.0
      %v868 = vmax.f32 %v796, 0.0
      %v869 = vmax.f32 %v799, 0.0
      %v870 = vmax.f32 %v804, 0.0
      %v871 = vmax.f32 %v807, 0.0
      %v872 = vmax.f32 %v812, 0.0
      %v873 = vmax.f32 %v815, 0.0
      %v874 = vmax.f32 %v820, 0.0
      %v875 = vmax.f32 %v823, 0.0
      %v876 = vmax.f32 %v828, 0.0
      %v877 = vmax.f32 %v831, 0.0
      %v878 = vmax.f32 %v836, 0.0
      %v879 = vmax.f32 %v839, 0.0
      %v880 = vmax.f32 %v844, 0.0
      %v881 = vmax.f32 %v847, 0.0
      %v882 = vpack.c.bf16 %v851, %v850
      %v883 = vpack.c.bf16 %v853, %v852
      %v884 = vpack.c.bf16 %v855, %v854
      %v885 = vpack.c.bf16 %v857, %v856
      %v886 = vpack.c.bf16 %v859, %v858
      %v887 = vpack.c.bf16 %v861, %v860
      %v888 = vpack.c.bf16 %v863, %v862
      %v889 = vpack.c.bf16 %v865, %v864
      %v890 = vpack.c.bf16 %v867, %v866
      %v891 = vpack.c.bf16 %v869, %v868
      %v892 = vpack.c.bf16 %v871, %v870
      %v893 = vpack.c.bf16 %v873, %v872
      %v894 = vpack.c.bf16 %v875, %v874
      %v895 = vpack.c.bf16 %v877, %v876
      %v896 = vpack.c.bf16 %v879, %v878
      %v897 = vpack.c.bf16 %v881, %v880
      %s898 = scalar_lea.vmem %s2, 64
      %v899 = vld [vmem:[%s898] sm:$0xf]
      %v900 = vld [vmem:[%s898 + $0x4] sm:$0xf]
      %v901 = vld [vmem:[%s898 + $0x8] sm:$0xf]
      %v902 = vld [vmem:[%s898 + $0xc] sm:$0xf]
      %v903 = vld [vmem:[%s898 + $0x10] sm:$0xf]
      %v904 = vld [vmem:[%s898 + $0x14] sm:$0xf]
      %v905 = vld [vmem:[%s898 + $0x18] sm:$0xf]
      %v906 = vld [vmem:[%s898 + $0x1c] sm:$0xf]
      %v907 = vld [vmem:[%s898 + $0x20] sm:$0xf]
      %v908 = vld [vmem:[%s898 + $0x24] sm:$0xf]
      %v909 = vld [vmem:[%s898 + $0x28] sm:$0xf]
      %v910 = vld [vmem:[%s898 + $0x2c] sm:$0xf]
      %v911 = vld [vmem:[%s898 + $0x30] sm:$0xf]
      %v912 = vld [vmem:[%s898 + $0x34] sm:$0xf]
      %v913 = vld [vmem:[%s898 + $0x38] sm:$0xf]
      %v914 = vld [vmem:[%s898 + $0x3c] sm:$0xf]
      %v915 = vld [vmem:[%s4 + $0x2] sm:$0x1]
      %v916 = vlaneseq
      %v917 = vshrl.u32 %v916, 7
      %v918 = vsub.s32 0, %v917
      %v919 = vrot.slane %v915, %v918
      %v936 = vunpack.c.l.b16 %v899
      %v937 = vunpack.c.l.b16 %v900
      %v938 = vunpack.c.l.b16 %v901
      %v939 = vunpack.c.l.b16 %v902
      %v940 = vunpack.c.l.b16 %v903
      %v941 = vunpack.c.l.b16 %v904
      %v942 = vunpack.c.l.b16 %v905
      %v943 = vunpack.c.l.b16 %v906
      %v944 = vunpack.c.l.b16 %v907
      %v945 = vunpack.c.l.b16 %v908
      %v946 = vunpack.c.l.b16 %v909
      %v947 = vunpack.c.l.b16 %v910
      %v948 = vunpack.c.l.b16 %v911
      %v949 = vunpack.c.l.b16 %v912
      %v950 = vunpack.c.l.b16 %v913
      %v951 = vunpack.c.l.b16 %v914
      %v952 = vpack.c.b16 %v937, %v936
      %v953 = vpack.c.b16 %v939, %v938
      %v954 = vpack.c.b16 %v941, %v940
      %v955 = vpack.c.b16 %v943, %v942
      %v956 = vpack.c.b16 %v945, %v944
      %v957 = vpack.c.b16 %v947, %v946
      %v958 = vpack.c.b16 %v949, %v948
      %v959 = vpack.c.b16 %v951, %v950
      %968 = vmatprep.subr.bf16.mxu0 0
      %969 = vmatpush1.bf16.msra.mxu0 %v952
      %970 = vmatprep.subr.bf16.mxu0 0
      %971 = vmatpush1.bf16.msra.mxu0 %v953
      %972 = vmatprep.subr.bf16.mxu0 0
      %973 = vmatpush1.bf16.msra.mxu0 %v954
      %974 = vmatprep.subr.bf16.mxu0 0
      %975 = vmatpush1.bf16.msra.mxu0 %v955
      %976 = vmatprep.subr.bf16.mxu0 0
      %977 = vmatpush1.bf16.msra.mxu0 %v956
      %978 = vmatprep.subr.bf16.mxu0 0
      %979 = vmatpush1.bf16.msra.mxu0 %v957
      %980 = vmatprep.subr.bf16.mxu0 0
      %981 = vmatpush1.bf16.msra.mxu0 %v958
      %982 = vmatprep.subr.bf16.mxu0 0
      %983 = vmatpush1.bf16.msra.mxu0 %v959
      %984 = vmatprep.subr.bf16.mxu0 0
      %985 = vmatpush1.bf16.msra.mxu0 0
      %986 = vmatprep.subr.bf16.mxu0 0
      %987 = vmatpush1.bf16.msra.mxu0 0
      %988 = vmatprep.subr.bf16.mxu0 0
      %989 = vmatpush1.bf16.msra.mxu0 0
      %990 = vmatprep.subr.bf16.mxu0 0
      %991 = vmatpush1.bf16.msra.mxu0 0
      %992 = vmatprep.subr.bf16.mxu0 0
      %993 = vmatpush1.bf16.msra.mxu0 0
      %994 = vmatprep.subr.bf16.mxu0 0
      %995 = vmatpush1.bf16.msra.mxu0 0
      %996 = vmatprep.subr.bf16.mxu0 0
      %997 = vmatpush1.bf16.msra.mxu0 0
      %998 = vmatprep.subr.bf16.mxu0 0
      %999 = vmatpush1.bf16.msra.mxu0 0
      %1000 = vmatprep.mubr.bf16.mxu0 0
      %1001 = vmatmul.mubr.bf16.gmra.mrb[0].mxu0 %v882
      %v1002 = vpop.f32.mrb[0].mxu0
      %v1003 = vadd.f32 %v919, %v1002
      %v1004 = vpop.f32.mrb[0].mxu0
      %v1005 = vpop.f32.mrb[0].mxu0
      %v1006 = vadd.f32 %v919, %v1005
      %v1007 = vpop.f32.mrb[0].mxu0
      %1008 = vmatprep.mubr.bf16.mxu0 0
      %1009 = vmatmul.mubr.bf16.gmra.mrb[0].mxu0 %v883
      %v1010 = vpop.f32.mrb[0].mxu0
      %v1011 = vadd.f32 %v919, %v1010
      %v1012 = vpop.f32.mrb[0].mxu0
      %v1013 = vpop.f32.mrb[0].mxu0
      %v1014 = vadd.f32 %v919, %v1013
      %v1015 = vpop.f32.mrb[0].mxu0
      %1016 = vmatprep.mubr.bf16.mxu0 0
      %1017 = vmatmul.mubr.bf16.gmra.mrb[0].mxu0 %v884
      %v1018 = vpop.f32.mrb[0].mxu0
      %v1019 = vadd.f32 %v919, %v1018
      %v1020 = vpop.f32.mrb[0].mxu0
      %v1021 = vpop.f32.mrb[0].mxu0
      %v1022 = vadd.f32 %v919, %v1021
      %v1023 = vpop.f32.mrb[0].mxu0
      %1024 = vmatprep.mubr.bf16.mxu0 0
      %1025 = vmatmul.mubr.bf16.gmra.mrb[0].mxu0 %v885
      %v1026 = vpop.f32.mrb[0].mxu0
      %v1027 = vadd.f32 %v919, %v1026
      %v1028 = vpop.f32.mrb[0].mxu0
      %v1029 = vpop.f32.mrb[0].mxu0
      %v1030 = vadd.f32 %v919, %v1029
      %v1031 = vpop.f32.mrb[0].mxu0
      %1032 = vmatprep.mubr.bf16.mxu0 0
      %1033 = vmatmul.mubr.bf16.gmra.mrb[0].mxu0 %v886
      %v1034 = vpop.f32.mrb[0].mxu0
      %v1035 = vadd.f32 %v919, %v1034
      %v1036 = vpop.f32.mrb[0].mxu0
      %v1037 = vpop.f32.mrb[0].mxu0
      %v1038 = vadd.f32 %v919, %v1037
      %v1039 = vpop.f32.mrb[0].mxu0
      %1040 = vmatprep.mubr.bf16.mxu0 0
      %1041 = vmatmul.mubr.bf16.gmra.mrb[0].mxu0 %v887
      %v1042 = vpop.f32.mrb[0].mxu0
      %v1043 = vadd.f32 %v919, %v1042
      %v1044 = vpop.f32.mrb[0].mxu0
      %v1045 = vpop.f32.mrb[0].mxu0
      %v1046 = vadd.f32 %v919, %v1045
      %v1047 = vpop.f32.mrb[0].mxu0
      %1048 = vmatprep.mubr.bf16.mxu0 0
      %1049 = vmatmul.mubr.bf16.gmra.mrb[0].mxu0 %v888
      %v1050 = vpop.f32.mrb[0].mxu0
      %v1051 = vadd.f32 %v919, %v1050
      %v1052 = vpop.f32.mrb[0].mxu0
      %v1053 = vpop.f32.mrb[0].mxu0
      %v1054 = vadd.f32 %v919, %v1053
      %v1055 = vpop.f32.mrb[0].mxu0
      %1056 = vmatprep.mubr.bf16.mxu0 0
      %1057 = vmatmul.mubr.bf16.gmra.mrb[0].mxu0 %v889
      %v1058 = vpop.f32.mrb[0].mxu0
      %v1059 = vadd.f32 %v919, %v1058
      %v1060 = vpop.f32.mrb[0].mxu0
      %v1061 = vpop.f32.mrb[0].mxu0
      %v1062 = vadd.f32 %v919, %v1061
      %v1063 = vpop.f32.mrb[0].mxu0
      %1064 = vmatprep.mubr.bf16.mxu0 0
      %1065 = vmatmul.mubr.bf16.gmra.mrb[0].mxu0 %v890
      %v1066 = vpop.f32.mrb[0].mxu0
      %v1067 = vadd.f32 %v919, %v1066
      %v1068 = vpop.f32.mrb[0].mxu0
      %v1069 = vpop.f32.mrb[0].mxu0
      %v1070 = vadd.f32 %v919, %v1069
      %v1071 = vpop.f32.mrb[0].mxu0
      %1072 = vmatprep.mubr.bf16.mxu0 0
      %1073 = vmatmul.mubr.bf16.gmra.mrb[0].mxu0 %v891
      %v1074 = vpop.f32.mrb[0].mxu0
      %v1075 = vadd.f32 %v919, %v1074
      %v1076 = vpop.f32.mrb[0].mxu0
      %v1077 = vpop.f32.mrb[0].mxu0
      %v1078 = vadd.f32 %v919, %v1077
      %v1079 = vpop.f32.mrb[0].mxu0
      %1080 = vmatprep.mubr.bf16.mxu0 0
      %1081 = vmatmul.mubr.bf16.gmra.mrb[0].mxu0 %v892
      %v1082 = vpop.f32.mrb[0].mxu0
      %v1083 = vadd.f32 %v919, %v1082
      %v1084 = vpop.f32.mrb[0].mxu0
      %v1085 = vpop.f32.mrb[0].mxu0
      %v1086 = vadd.f32 %v919, %v1085
      %v1087 = vpop.f32.mrb[0].mxu0
      %1088 = vmatprep.mubr.bf16.mxu0 0
      %1089 = vmatmul.mubr.bf16.gmra.mrb[0].mxu0 %v893
      %v1090 = vpop.f32.mrb[0].mxu0
      %v1091 = vadd.f32 %v919, %v1090
      %v1092 = vpop.f32.mrb[0].mxu0
      %v1093 = vpop.f32.mrb[0].mxu0
      %v1094 = vadd.f32 %v919, %v1093
      %v1095 = vpop.f32.mrb[0].mxu0
      %1096 = vmatprep.mubr.bf16.mxu0 0
      %1097 = vmatmul.mubr.bf16.gmra.mrb[0].mxu0 %v894
      %v1098 = vpop.f32.mrb[0].mxu0
      %v1099 = vadd.f32 %v919, %v1098
      %v1100 = vpop.f32.mrb[0].mxu0
      %v1101 = vpop.f32.mrb[0].mxu0
      %v1102 = vadd.f32 %v919, %v1101
      %v1103 = vpop.f32.mrb[0].mxu0
      %1104 = vmatprep.mubr.bf16.mxu0 0
      %1105 = vmatmul.mubr.bf16.gmra.mrb[0].mxu0 %v895
      %v1106 = vpop.f32.mrb[0].mxu0
      %v1107 = vadd.f32 %v919, %v1106
      %v1108 = vpop.f32.mrb[0].mxu0
      %v1109 = vpop.f32.mrb[0].mxu0
      %v1110 = vadd.f32 %v919, %v1109
      %v1111 = vpop.f32.mrb[0].mxu0
      %1112 = vmatprep.mubr.bf16.mxu0 0
      %1113 = vmatmul.mubr.bf16.gmra.mrb[0].mxu0 %v896
      %v1114 = vpop.f32.mrb[0].mxu0
      %v1115 = vadd.f32 %v919, %v1114
      %v1116 = vpop.f32.mrb[0].mxu0
      %v1117 = vpop.f32.mrb[0].mxu0
      %v1118 = vadd.f32 %v919, %v1117
      %v1119 = vpop.f32.mrb[0].mxu0
      %1120 = vmatprep.mubr.bf16.mxu0 0
      %1121 = vmatmul.mubr.bf16.gmra.mrb[0].mxu0 %v897
      %v1122 = vpop.f32.mrb[0].mxu0
      %v1123 = vadd.f32 %v919, %v1122
      %v1124 = vpop.f32.mrb[0].mxu0
      %v1125 = vpop.f32.mrb[0].mxu0
      %v1126 = vadd.f32 %v919, %v1125
      %v1127 = vpop.f32.mrb[0].mxu0
      %1128 = vdwg.mxu0
      %v1129 = vmax.f32 %v1003, 0.0
      %v1130 = vmax.f32 %v1006, 0.0
      %v1131 = vmax.f32 %v1011, 0.0
      %v1132 = vmax.f32 %v1014, 0.0
      %v1133 = vmax.f32 %v1019, 0.0
      %v1134 = vmax.f32 %v1022, 0.0
      %v1135 = vmax.f32 %v1027, 0.0
      %v1136 = vmax.f32 %v1030, 0.0
      %v1137 = vmax.f32 %v1035, 0.0
      %v1138 = vmax.f32 %v1038, 0.0
      %v1139 = vmax.f32 %v1043, 0.0
      %v1140 = vmax.f32 %v1046, 0.0
      %v1141 = vmax.f32 %v1051, 0.0
      %v1142 = vmax.f32 %v1054, 0.0
      %v1143 = vmax.f32 %v1059, 0.0
      %v1144 = vmax.f32 %v1062, 0.0
      %v1145 = vmax.f32 %v1067, 0.0
      %v1146 = vmax.f32 %v1070, 0.0
      %v1147 = vmax.f32 %v1075, 0.0
      %v1148 = vmax.f32 %v1078, 0.0
      %v1149 = vmax.f32 %v1083, 0.0
      %v1150 = vmax.f32 %v1086, 0.0
      %v1151 = vmax.f32 %v1091, 0.0
      %v1152 = vmax.f32 %v1094, 0.0
      %v1153 = vmax.f32 %v1099, 0.0
      %v1154 = vmax.f32 %v1102, 0.0
      %v1155 = vmax.f32 %v1107, 0.0
      %v1156 = vmax.f32 %v1110, 0.0
      %v1157 = vmax.f32 %v1115, 0.0
      %v1158 = vmax.f32 %v1118, 0.0
      %v1159 = vmax.f32 %v1123, 0.0
      %v1160 = vmax.f32 %v1126, 0.0
      %v1161 = vpack.c.bf16 %v1130, %v1129
      %v1162 = vpack.c.bf16 %v1132, %v1131
      %v1163 = vpack.c.bf16 %v1134, %v1133
      %v1164 = vpack.c.bf16 %v1136, %v1135
      %v1165 = vpack.c.bf16 %v1138, %v1137
      %v1166 = vpack.c.bf16 %v1140, %v1139
      %v1167 = vpack.c.bf16 %v1142, %v1141
      %v1168 = vpack.c.bf16 %v1144, %v1143
      %v1169 = vpack.c.bf16 %v1146, %v1145
      %v1170 = vpack.c.bf16 %v1148, %v1147
      %v1171 = vpack.c.bf16 %v1150, %v1149
      %v1172 = vpack.c.bf16 %v1152, %v1151
      %v1173 = vpack.c.bf16 %v1154, %v1153
      %v1174 = vpack.c.bf16 %v1156, %v1155
      %v1175 = vpack.c.bf16 %v1158, %v1157
      %v1176 = vpack.c.bf16 %v1160, %v1159
      %s1177 = scalar_lea.vmem %s2, 128
      %v1178 = vld [vmem:[%s1177] sm:$0xf]
      %v1179 = vld [vmem:[%s1177 + $0x4] sm:$0xf]
      %v1180 = vld [vmem:[%s1177 + $0x8] sm:$0xf]
      %v1181 = vld [vmem:[%s1177 + $0xc] sm:$0xf]
      %v1182 = vld [vmem:[%s1177 + $0x10] sm:$0xf]
      %v1183 = vld [vmem:[%s1177 + $0x14] sm:$0xf]
      %v1184 = vld [vmem:[%s1177 + $0x18] sm:$0xf]
      %v1185 = vld [vmem:[%s1177 + $0x1c] sm:$0xf]
      %v1186 = vld [vmem:[%s1177 + $0x20] sm:$0xf]
      %v1187 = vld [vmem:[%s1177 + $0x24] sm:$0xf]
      %v1188 = vld [vmem:[%s1177 + $0x28] sm:$0xf]
      %v1189 = vld [vmem:[%s1177 + $0x2c] sm:$0xf]
      %v1190 = vld [vmem:[%s1177 + $0x30] sm:$0xf]
      %v1191 = vld [vmem:[%s1177 + $0x34] sm:$0xf]
      %v1192 = vld [vmem:[%s1177 + $0x38] sm:$0xf]
      %v1193 = vld [vmem:[%s1177 + $0x3c] sm:$0xf]
      %v1194 = vld [vmem:[%s4 + $0x3] sm:$0x1]
      %v1195 = vlaneseq
      %v1196 = vshrl.u32 %v1195, 7
      %v1197 = vsub.s32 0, %v1196
      %v1198 = vrot.slane %v1194, %v1197
      %v1215 = vunpack.c.l.b16 %v1178
      %v1216 = vunpack.c.l.b16 %v1179
      %v1217 = vunpack.c.l.b16 %v1180
      %v1218 = vunpack.c.l.b16 %v1181
      %v1219 = vunpack.c.l.b16 %v1182
      %v1220 = vunpack.c.l.b16 %v1183
      %v1221 = vunpack.c.l.b16 %v1184
      %v1222 = vunpack.c.l.b16 %v1185
      %v1223 = vunpack.c.l.b16 %v1186
      %v1224 = vunpack.c.l.b16 %v1187
      %v1225 = vunpack.c.l.b16 %v1188
      %v1226 = vunpack.c.l.b16 %v1189
      %v1227 = vunpack.c.l.b16 %v1190
      %v1228 = vunpack.c.l.b16 %v1191
      %v1229 = vunpack.c.l.b16 %v1192
      %v1230 = vunpack.c.l.b16 %v1193
      %v1231 = vpack.c.b16 %v1216, %v1215
      %v1232 = vpack.c.b16 %v1218, %v1217
      %v1233 = vpack.c.b16 %v1220, %v1219
      %v1234 = vpack.c.b16 %v1222, %v1221
      %v1235 = vpack.c.b16 %v1224, %v1223
      %v1236 = vpack.c.b16 %v1226, %v1225
      %v1237 = vpack.c.b16 %v1228, %v1227
      %v1238 = vpack.c.b16 %v1230, %v1229
      %1247 = vmatprep.subr.bf16.mxu0 0
      %1248 = vmatpush1.bf16.msra.mxu0 %v1231
      %1249 = vmatprep.subr.bf16.mxu0 0
      %1250 = vmatpush1.bf16.msra.mxu0 %v1232
      %1251 = vmatprep.subr.bf16.mxu0 0
      %1252 = vmatpush1.bf16.msra.mxu0 %v1233
      %1253 = vmatprep.subr.bf16.mxu0 0
      %1254 = vmatpush1.bf16.msra.mxu0 %v1234
      %1255 = vmatprep.subr.bf16.mxu0 0
      %1256 = vmatpush1.bf16.msra.mxu0 %v1235
      %1257 = vmatprep.subr.bf16.mxu0 0
      %1258 = vmatpush1.bf16.msra.mxu0 %v1236
      %1259 = vmatprep.subr.bf16.mxu0 0
      %1260 = vmatpush1.bf16.msra.mxu0 %v1237
      %1261 = vmatprep.subr.bf16.mxu0 0
      %1262 = vmatpush1.bf16.msra.mxu0 %v1238
      %1263 = vmatprep.subr.bf16.mxu0 0
      %1264 = vmatpush1.bf16.msra.mxu0 0
      %1265 = vmatprep.subr.bf16.mxu0 0
      %1266 = vmatpush1.bf16.msra.mxu0 0
      %1267 = vmatprep.subr.bf16.mxu0 0
      %1268 = vmatpush1.bf16.msra.mxu0 0
      %1269 = vmatprep.subr.bf16.mxu0 0
      %1270 = vmatpush1.bf16.msra.mxu0 0
      %1271 = vmatprep.subr.bf16.mxu0 0
      %1272 = vmatpush1.bf16.msra.mxu0 0
      %1273 = vmatprep.subr.bf16.mxu0 0
      %1274 = vmatpush1.bf16.msra.mxu0 0
      %1275 = vmatprep.subr.bf16.mxu0 0
      %1276 = vmatpush1.bf16.msra.mxu0 0
      %1277 = vmatprep.subr.bf16.mxu0 0
      %1278 = vmatpush1.bf16.msra.mxu0 0
      %1279 = vmatprep.mubr.bf16.mxu0 0
      %1280 = vmatmul.mubr.bf16.gmra.mrb[0].mxu0 %v1161
      %v1281 = vpop.f32.mrb[0].mxu0
      %v1282 = vadd.f32 %v1198, %v1281
      %v1283 = vpop.f32.mrb[0].mxu0
      %v1284 = vpop.f32.mrb[0].mxu0
      %v1285 = vadd.f32 %v1198, %v1284
      %v1286 = vpop.f32.mrb[0].mxu0
      %1287 = vmatprep.mubr.bf16.mxu0 0
      %1288 = vmatmul.mubr.bf16.gmra.mrb[0].mxu0 %v1162
      %v1289 = vpop.f32.mrb[0].mxu0
      %v1290 = vadd.f32 %v1198, %v1289
      %v1291 = vpop.f32.mrb[0].mxu0
      %v1292 = vpop.f32.mrb[0].mxu0
      %v1293 = vadd.f32 %v1198, %v1292
      %v1294 = vpop.f32.mrb[0].mxu0
      %1295 = vmatprep.mubr.bf16.mxu0 0
      %1296 = vmatmul.mubr.bf16.gmra.mrb[0].mxu0 %v1163
      %v1297 = vpop.f32.mrb[0].mxu0
      %v1298 = vadd.f32 %v1198, %v1297
      %v1299 = vpop.f32.mrb[0].mxu0
      %v1300 = vpop.f32.mrb[0].mxu0
      %v1301 = vadd.f32 %v1198, %v1300
      %v1302 = vpop.f32.mrb[0].mxu0
      %1303 = vmatprep.mubr.bf16.mxu0 0
      %1304 = vmatmul.mubr.bf16.gmra.mrb[0].mxu0 %v1164
      %v1305 = vpop.f32.mrb[0].mxu0
      %v1306 = vadd.f32 %v1198, %v1305
      %v1307 = vpop.f32.mrb[0].mxu0
      %v1308 = vpop.f32.mrb[0].mxu0
      %v1309 = vadd.f32 %v1198, %v1308
      %v1310 = vpop.f32.mrb[0].mxu0
      %1311 = vmatprep.mubr.bf16.mxu0 0
      %1312 = vmatmul.mubr.bf16.gmra.mrb[0].mxu0 %v1165
      %v1313 = vpop.f32.mrb[0].mxu0
      %v1314 = vadd.f32 %v1198, %v1313
      %v1315 = vpop.f32.mrb[0].mxu0
      %v1316 = vpop.f32.mrb[0].mxu0
      %v1317 = vadd.f32 %v1198, %v1316
      %v1318 = vpop.f32.mrb[0].mxu0
      %1319 = vmatprep.mubr.bf16.mxu0 0
      %1320 = vmatmul.mubr.bf16.gmra.mrb[0].mxu0 %v1166
      %v1321 = vpop.f32.mrb[0].mxu0
      %v1322 = vadd.f32 %v1198, %v1321
      %v1323 = vpop.f32.mrb[0].mxu0
      %v1324 = vpop.f32.mrb[0].mxu0
      %v1325 = vadd.f32 %v1198, %v1324
      %v1326 = vpop.f32.mrb[0].mxu0
      %1327 = vmatprep.mubr.bf16.mxu0 0
      %1328 = vmatmul.mubr.bf16.gmra.mrb[0].mxu0 %v1167
      %v1329 = vpop.f32.mrb[0].mxu0
      %v1330 = vadd.f32 %v1198, %v1329
      %v1331 = vpop.f32.mrb[0].mxu0
      %v1332 = vpop.f32.mrb[0].mxu0
      %v1333 = vadd.f32 %v1198, %v1332
      %v1334 = vpop.f32.mrb[0].mxu0
      %1335 = vmatprep.mubr.bf16.mxu0 0
      %1336 = vmatmul.mubr.bf16.gmra.mrb[0].mxu0 %v1168
      %v1337 = vpop.f32.mrb[0].mxu0
      %v1338 = vadd.f32 %v1198, %v1337
      %v1339 = vpop.f32.mrb[0].mxu0
      %v1340 = vpop.f32.mrb[0].mxu0
      %v1341 = vadd.f32 %v1198, %v1340
      %v1342 = vpop.f32.mrb[0].mxu0
      %1343 = vmatprep.mubr.bf16.mxu0 0
      %1344 = vmatmul.mubr.bf16.gmra.mrb[0].mxu0 %v1169
      %v1345 = vpop.f32.mrb[0].mxu0
      %v1346 = vadd.f32 %v1198, %v1345
      %v1347 = vpop.f32.mrb[0].mxu0
      %v1348 = vpop.f32.mrb[0].mxu0
      %v1349 = vadd.f32 %v1198, %v1348
      %v1350 = vpop.f32.mrb[0].mxu0
      %1351 = vmatprep.mubr.bf16.mxu0 0
      %1352 = vmatmul.mubr.bf16.gmra.mrb[0].mxu0 %v1170
      %v1353 = vpop.f32.mrb[0].mxu0
      %v1354 = vadd.f32 %v1198, %v1353
      %v1355 = vpop.f32.mrb[0].mxu0
      %v1356 = vpop.f32.mrb[0].mxu0
      %v1357 = vadd.f32 %v1198, %v1356
      %v1358 = vpop.f32.mrb[0].mxu0
      %1359 = vmatprep.mubr.bf16.mxu0 0
      %1360 = vmatmul.mubr.bf16.gmra.mrb[0].mxu0 %v1171
      %v1361 = vpop.f32.mrb[0].mxu0
      %v1362 = vadd.f32 %v1198, %v1361
      %v1363 = vpop.f32.mrb[0].mxu0
      %v1364 = vpop.f32.mrb[0].mxu0
      %v1365 = vadd.f32 %v1198, %v1364
      %v1366 = vpop.f32.mrb[0].mxu0
      %1367 = vmatprep.mubr.bf16.mxu0 0
      %1368 = vmatmul.mubr.bf16.gmra.mrb[0].mxu0 %v1172
      %v1369 = vpop.f32.mrb[0].mxu0
      %v1370 = vadd.f32 %v1198, %v1369
      %v1371 = vpop.f32.mrb[0].mxu0
      %v1372 = vpop.f32.mrb[0].mxu0
      %v1373 = vadd.f32 %v1198, %v1372
      %v1374 = vpop.f32.mrb[0].mxu0
      %1375 = vmatprep.mubr.bf16.mxu0 0
      %1376 = vmatmul.mubr.bf16.gmra.mrb[0].mxu0 %v1173
      %v1377 = vpop.f32.mrb[0].mxu0
      %v1378 = vadd.f32 %v1198, %v1377
      %v1379 = vpop.f32.mrb[0].mxu0
      %v1380 = vpop.f32.mrb[0].mxu0
      %v1381 = vadd.f32 %v1198, %v1380
      %v1382 = vpop.f32.mrb[0].mxu0
      %1383 = vmatprep.mubr.bf16.mxu0 0
      %1384 = vmatmul.mubr.bf16.gmra.mrb[0].mxu0 %v1174
      %v1385 = vpop.f32.mrb[0].mxu0
      %v1386 = vadd.f32 %v1198, %v1385
      %v1387 = vpop.f32.mrb[0].mxu0
      %v1388 = vpop.f32.mrb[0].mxu0
      %v1389 = vadd.f32 %v1198, %v1388
      %v1390 = vpop.f32.mrb[0].mxu0
      %1391 = vmatprep.mubr.bf16.mxu0 0
      %1392 = vmatmul.mubr.bf16.gmra.mrb[0].mxu0 %v1175
      %v1393 = vpop.f32.mrb[0].mxu0
      %v1394 = vadd.f32 %v1198, %v1393
      %v1395 = vpop.f32.mrb[0].mxu0
      %v1396 = vpop.f32.mrb[0].mxu0
      %v1397 = vadd.f32 %v1198, %v1396
      %v1398 = vpop.f32.mrb[0].mxu0
      %1399 = vmatprep.mubr.bf16.mxu0 0
      %1400 = vmatmul.mubr.bf16.gmra.mrb[0].mxu0 %v1176
      %v1401 = vpop.f32.mrb[0].mxu0
      %v1402 = vadd.f32 %v1198, %v1401
      %v1403 = vpop.f32.mrb[0].mxu0
      %v1404 = vpop.f32.mrb[0].mxu0
      %v1405 = vadd.f32 %v1198, %v1404
      %v1406 = vpop.f32.mrb[0].mxu0
      %1407 = vdwg.mxu0
      %v1408 = vmax.f32 %v1282, 0.0
      %v1409 = vmax.f32 %v1285, 0.0
      %v1410 = vmax.f32 %v1290, 0.0
      %v1411 = vmax.f32 %v1293, 0.0
      %v1412 = vmax.f32 %v1298, 0.0
      %v1413 = vmax.f32 %v1301, 0.0
      %v1414 = vmax.f32 %v1306, 0.0
      %v1415 = vmax.f32 %v1309, 0.0
      %v1416 = vmax.f32 %v1314, 0.0
      %v1417 = vmax.f32 %v1317, 0.0
      %v1418 = vmax.f32 %v1322, 0.0
      %v1419 = vmax.f32 %v1325, 0.0
      %v1420 = vmax.f32 %v1330, 0.0
      %v1421 = vmax.f32 %v1333, 0.0
      %v1422 = vmax.f32 %v1338, 0.0
      %v1423 = vmax.f32 %v1341, 0.0
      %v1424 = vmax.f32 %v1346, 0.0
      %v1425 = vmax.f32 %v1349, 0.0
      %v1426 = vmax.f32 %v1354, 0.0
      %v1427 = vmax.f32 %v1357, 0.0
      %v1428 = vmax.f32 %v1362, 0.0
      %v1429 = vmax.f32 %v1365, 0.0
      %v1430 = vmax.f32 %v1370, 0.0
      %v1431 = vmax.f32 %v1373, 0.0
      %v1432 = vmax.f32 %v1378, 0.0
      %v1433 = vmax.f32 %v1381, 0.0
      %v1434 = vmax.f32 %v1386, 0.0
      %v1435 = vmax.f32 %v1389, 0.0
      %v1436 = vmax.f32 %v1394, 0.0
      %v1437 = vmax.f32 %v1397, 0.0
      %v1438 = vmax.f32 %v1402, 0.0
      %v1439 = vmax.f32 %v1405, 0.0
      %v1440 = vpack.c.bf16 %v1409, %v1408
      %v1441 = vpack.c.bf16 %v1411, %v1410
      %v1442 = vpack.c.bf16 %v1413, %v1412
      %v1443 = vpack.c.bf16 %v1415, %v1414
      %v1444 = vpack.c.bf16 %v1417, %v1416
      %v1445 = vpack.c.bf16 %v1419, %v1418
      %v1446 = vpack.c.bf16 %v1421, %v1420
      %v1447 = vpack.c.bf16 %v1423, %v1422
      %v1448 = vpack.c.bf16 %v1425, %v1424
      %v1449 = vpack.c.bf16 %v1427, %v1426
      %v1450 = vpack.c.bf16 %v1429, %v1428
      %v1451 = vpack.c.bf16 %v1431, %v1430
      %v1452 = vpack.c.bf16 %v1433, %v1432
      %v1453 = vpack.c.bf16 %v1435, %v1434
      %v1454 = vpack.c.bf16 %v1437, %v1436
      %v1455 = vpack.c.bf16 %v1439, %v1438
      %v1456 = vld [vmem:[%s3] sm:$0xf]
      %v1457 = vld [vmem:[%s3 + $0x4] sm:$0xf]
      %v1458 = vld [vmem:[%s3 + $0x8] sm:$0xf]
      %v1459 = vld [vmem:[%s3 + $0xc] sm:$0xf]
      %v1460 = vld [vmem:[%s3 + $0x10] sm:$0xf]
      %v1461 = vld [vmem:[%s3 + $0x14] sm:$0xf]
      %v1462 = vld [vmem:[%s3 + $0x18] sm:$0xf]
      %v1463 = vld [vmem:[%s3 + $0x1c] sm:$0xf]
      %v1464 = vld [vmem:[%s3 + $0x20] sm:$0xf]
      %v1465 = vld [vmem:[%s3 + $0x24] sm:$0xf]
      %v1466 = vld [vmem:[%s3 + $0x28] sm:$0xf]
      %v1467 = vld [vmem:[%s3 + $0x2c] sm:$0xf]
      %v1468 = vld [vmem:[%s3 + $0x30] sm:$0xf]
      %v1469 = vld [vmem:[%s3 + $0x34] sm:$0xf]
      %v1470 = vld [vmem:[%s3 + $0x38] sm:$0xf]
      %v1471 = vld [vmem:[%s3 + $0x3c] sm:$0xf]
      %v1472 = vld [vmem:[%s4 + $0x4] sm:$0x1]
      %v1473 = vlaneseq
      %v1474 = vshrl.u32 %v1473, 7
      %v1475 = vsub.s32 0, %v1474
      %v1476 = vrot.slane %v1472, %v1475
      %v1493 = vunpack.c.l.b16 %v1456
      %v1494 = vunpack.c.l.b16 %v1457
      %v1495 = vunpack.c.l.b16 %v1458
      %v1496 = vunpack.c.l.b16 %v1459
      %v1497 = vunpack.c.l.b16 %v1460
      %v1498 = vunpack.c.l.b16 %v1461
      %v1499 = vunpack.c.l.b16 %v1462
      %v1500 = vunpack.c.l.b16 %v1463
      %v1501 = vunpack.c.l.b16 %v1464
      %v1502 = vunpack.c.l.b16 %v1465
      %v1503 = vunpack.c.l.b16 %v1466
      %v1504 = vunpack.c.l.b16 %v1467
      %v1505 = vunpack.c.l.b16 %v1468
      %v1506 = vunpack.c.l.b16 %v1469
      %v1507 = vunpack.c.l.b16 %v1470
      %v1508 = vunpack.c.l.b16 %v1471
      %v1509 = vpack.c.b16 %v1494, %v1493
      %v1510 = vpack.c.b16 %v1496, %v1495
      %v1511 = vpack.c.b16 %v1498, %v1497
      %v1512 = vpack.c.b16 %v1500, %v1499
      %v1513 = vpack.c.b16 %v1502, %v1501
      %v1514 = vpack.c.b16 %v1504, %v1503
      %v1515 = vpack.c.b16 %v1506, %v1505
      %v1516 = vpack.c.b16 %v1508, %v1507
      %1525 = vmatprep.subr.bf16.mxu0 0
      %1526 = vmatpush1.bf16.msra.mxu0 %v1509
      %1527 = vmatprep.subr.bf16.mxu0 0
      %1528 = vmatpush1.bf16.msra.mxu0 %v1510
      %1529 = vmatprep.subr.bf16.mxu0 0
      %1530 = vmatpush1.bf16.msra.mxu0 %v1511
      %1531 = vmatprep.subr.bf16.mxu0 0
      %1532 = vmatpush1.bf16.msra.mxu0 %v1512
      %1533 = vmatprep.subr.bf16.mxu0 0
      %1534 = vmatpush1.bf16.msra.mxu0 %v1513
      %1535 = vmatprep.subr.bf16.mxu0 0
      %1536 = vmatpush1.bf16.msra.mxu0 %v1514
      %1537 = vmatprep.subr.bf16.mxu0 0
      %1538 = vmatpush1.bf16.msra.mxu0 %v1515
      %1539 = vmatprep.subr.bf16.mxu0 0
      %1540 = vmatpush1.bf16.msra.mxu0 %v1516
      %1541 = vmatprep.subr.bf16.mxu0 0
      %1542 = vmatpush1.bf16.msra.mxu0 0
      %1543 = vmatprep.subr.bf16.mxu0 0
      %1544 = vmatpush1.bf16.msra.mxu0 0
      %1545 = vmatprep.subr.bf16.mxu0 0
      %1546 = vmatpush1.bf16.msra.mxu0 0
      %1547 = vmatprep.subr.bf16.mxu0 0
      %1548 = vmatpush1.bf16.msra.mxu0 0
      %1549 = vmatprep.subr.bf16.mxu0 0
      %1550 = vmatpush1.bf16.msra.mxu0 0
      %1551 = vmatprep.subr.bf16.mxu0 0
      %1552 = vmatpush1.bf16.msra.mxu0 0
      %1553 = vmatprep.subr.bf16.mxu0 0
      %1554 = vmatpush1.bf16.msra.mxu0 0
      %1555 = vmatprep.subr.bf16.mxu0 0
      %1556 = vmatpush1.bf16.msra.mxu0 0
      %1557 = vmatprep.mubr.bf16.mxu0 0
      %1558 = vmatmul.mubr.bf16.gmra.mrb[0].mxu0 %v1440
      %v1559 = vpop.f32.mrb[0].mxu0
      %v1560 = vadd.f32 %v1476, %v1559
      %v1561 = vpop.f32.mrb[0].mxu0
      %v1562 = vpop.f32.mrb[0].mxu0
      %v1563 = vadd.f32 %v1476, %v1562
      %v1564 = vpop.f32.mrb[0].mxu0
      %1565 = vmatprep.mubr.bf16.mxu0 0
      %1566 = vmatmul.mubr.bf16.gmra.mrb[0].mxu0 %v1441
      %v1567 = vpop.f32.mrb[0].mxu0
      %v1568 = vadd.f32 %v1476, %v1567
      %v1569 = vpop.f32.mrb[0].mxu0
      %v1570 = vpop.f32.mrb[0].mxu0
      %v1571 = vadd.f32 %v1476, %v1570
      %v1572 = vpop.f32.mrb[0].mxu0
      %1573 = vmatprep.mubr.bf16.mxu0 0
      %1574 = vmatmul.mubr.bf16.gmra.mrb[0].mxu0 %v1442
      %v1575 = vpop.f32.mrb[0].mxu0
      %v1576 = vadd.f32 %v1476, %v1575
      %v1577 = vpop.f32.mrb[0].mxu0
      %v1578 = vpop.f32.mrb[0].mxu0
      %v1579 = vadd.f32 %v1476, %v1578
      %v1580 = vpop.f32.mrb[0].mxu0
      %1581 = vmatprep.mubr.bf16.mxu0 0
      %1582 = vmatmul.mubr.bf16.gmra.mrb[0].mxu0 %v1443
      %v1583 = vpop.f32.mrb[0].mxu0
      %v1584 = vadd.f32 %v1476, %v1583
      %v1585 = vpop.f32.mrb[0].mxu0
      %v1586 = vpop.f32.mrb[0].mxu0
      %v1587 = vadd.f32 %v1476, %v1586
      %v1588 = vpop.f32.mrb[0].mxu0
      %1589 = vmatprep.mubr.bf16.mxu0 0
      %1590 = vmatmul.mubr.bf16.gmra.mrb[0].mxu0 %v1444
      %v1591 = vpop.f32.mrb[0].mxu0
      %v1592 = vadd.f32 %v1476, %v1591
      %v1593 = vpop.f32.mrb[0].mxu0
      %v1594 = vpop.f32.mrb[0].mxu0
      %v1595 = vadd.f32 %v1476, %v1594
      %v1596 = vpop.f32.mrb[0].mxu0
      %1597 = vmatprep.mubr.bf16.mxu0 0
      %1598 = vmatmul.mubr.bf16.gmra.mrb[0].mxu0 %v1445
      %v1599 = vpop.f32.mrb[0].mxu0
      %v1600 = vadd.f32 %v1476, %v1599
      %v1601 = vpop.f32.mrb[0].mxu0
      %v1602 = vpop.f32.mrb[0].mxu0
      %v1603 = vadd.f32 %v1476, %v1602
      %v1604 = vpop.f32.mrb[0].mxu0
      %1605 = vmatprep.mubr.bf16.mxu0 0
      %1606 = vmatmul.mubr.bf16.gmra.mrb[0].mxu0 %v1446
      %v1607 = vpop.f32.mrb[0].mxu0
      %v1608 = vadd.f32 %v1476, %v1607
      %v1609 = vpop.f32.mrb[0].mxu0
      %v1610 = vpop.f32.mrb[0].mxu0
      %v1611 = vadd.f32 %v1476, %v1610
      %v1612 = vpop.f32.mrb[0].mxu0
      %1613 = vmatprep.mubr.bf16.mxu0 0
      %1614 = vmatmul.mubr.bf16.gmra.mrb[0].mxu0 %v1447
      %v1615 = vpop.f32.mrb[0].mxu0
      %v1616 = vadd.f32 %v1476, %v1615
      %v1617 = vpop.f32.mrb[0].mxu0
      %v1618 = vpop.f32.mrb[0].mxu0
      %v1619 = vadd.f32 %v1476, %v1618
      %v1620 = vpop.f32.mrb[0].mxu0
      %1621 = vmatprep.mubr.bf16.mxu0 0
      %1622 = vmatmul.mubr.bf16.gmra.mrb[0].mxu0 %v1448
      %v1623 = vpop.f32.mrb[0].mxu0
      %v1624 = vadd.f32 %v1476, %v1623
      %v1625 = vpop.f32.mrb[0].mxu0
      %v1626 = vpop.f32.mrb[0].mxu0
      %v1627 = vadd.f32 %v1476, %v1626
      %v1628 = vpop.f32.mrb[0].mxu0
      %1629 = vmatprep.mubr.bf16.mxu0 0
      %1630 = vmatmul.mubr.bf16.gmra.mrb[0].mxu0 %v1449
      %v1631 = vpop.f32.mrb[0].mxu0
      %v1632 = vadd.f32 %v1476, %v1631
      %v1633 = vpop.f32.mrb[0].mxu0
      %v1634 = vpop.f32.mrb[0].mxu0
      %v1635 = vadd.f32 %v1476, %v1634
      %v1636 = vpop.f32.mrb[0].mxu0
      %1637 = vmatprep.mubr.bf16.mxu0 0
      %1638 = vmatmul.mubr.bf16.gmra.mrb[0].mxu0 %v1450
      %v1639 = vpop.f32.mrb[0].mxu0
      %v1640 = vadd.f32 %v1476, %v1639
      %v1641 = vpop.f32.mrb[0].mxu0
      %v1642 = vpop.f32.mrb[0].mxu0
      %v1643 = vadd.f32 %v1476, %v1642
      %v1644 = vpop.f32.mrb[0].mxu0
      %1645 = vmatprep.mubr.bf16.mxu0 0
      %1646 = vmatmul.mubr.bf16.gmra.mrb[0].mxu0 %v1451
      %v1647 = vpop.f32.mrb[0].mxu0
      %v1648 = vadd.f32 %v1476, %v1647
      %v1649 = vpop.f32.mrb[0].mxu0
      %v1650 = vpop.f32.mrb[0].mxu0
      %v1651 = vadd.f32 %v1476, %v1650
      %v1652 = vpop.f32.mrb[0].mxu0
      %1653 = vmatprep.mubr.bf16.mxu0 0
      %1654 = vmatmul.mubr.bf16.gmra.mrb[0].mxu0 %v1452
      %v1655 = vpop.f32.mrb[0].mxu0
      %v1656 = vadd.f32 %v1476, %v1655
      %v1657 = vpop.f32.mrb[0].mxu0
      %v1658 = vpop.f32.mrb[0].mxu0
      %v1659 = vadd.f32 %v1476, %v1658
      %v1660 = vpop.f32.mrb[0].mxu0
      %1661 = vmatprep.mubr.bf16.mxu0 0
      %1662 = vmatmul.mubr.bf16.gmra.mrb[0].mxu0 %v1453
      %v1663 = vpop.f32.mrb[0].mxu0
      %v1664 = vadd.f32 %v1476, %v1663
      %v1665 = vpop.f32.mrb[0].mxu0
      %v1666 = vpop.f32.mrb[0].mxu0
      %v1667 = vadd.f32 %v1476, %v1666
      %v1668 = vpop.f32.mrb[0].mxu0
      %1669 = vmatprep.mubr.bf16.mxu0 0
      %1670 = vmatmul.mubr.bf16.gmra.mrb[0].mxu0 %v1454
      %v1671 = vpop.f32.mrb[0].mxu0
      %v1672 = vadd.f32 %v1476, %v1671
      %v1673 = vpop.f32.mrb[0].mxu0
      %v1674 = vpop.f32.mrb[0].mxu0
      %v1675 = vadd.f32 %v1476, %v1674
      %v1676 = vpop.f32.mrb[0].mxu0
      %1677 = vmatprep.mubr.bf16.mxu0 0
      %1678 = vmatmul.mubr.bf16.gmra.mrb[0].mxu0 %v1455
      %v1679 = vpop.f32.mrb[0].mxu0
      %v1680 = vadd.f32 %v1476, %v1679
      %v1681 = vpop.f32.mrb[0].mxu0
      %v1682 = vpop.f32.mrb[0].mxu0
      %v1683 = vadd.f32 %v1476, %v1682
      %v1684 = vpop.f32.mrb[0].mxu0
      %1685 = vdwg.mxu0
      %1686 = vmax.xlane.f32.xlu0 %v1560
      %v1687 = vpop.xlane.xlu0 %1686
      %1688 = vmax.xlane.f32.xlu0 %v1563
      %v1689 = vpop.xlane.xlu0 %1688
      %1690 = vmax.xlane.f32.xlu0 %v1568
      %v1691 = vpop.xlane.xlu0 %1690
      %1692 = vmax.xlane.f32.xlu0 %v1571
      %v1693 = vpop.xlane.xlu0 %1692
      %1694 = vmax.xlane.f32.xlu0 %v1576
      %v1695 = vpop.xlane.xlu0 %1694
      %1696 = vmax.xlane.f32.xlu0 %v1579
      %v1697 = vpop.xlane.xlu0 %1696
      %1698 = vmax.xlane.f32.xlu0 %v1584
      %v1699 = vpop.xlane.xlu0 %1698
      %1700 = vmax.xlane.f32.xlu0 %v1587
      %v1701 = vpop.xlane.xlu0 %1700
      %1702 = vmax.xlane.f32.xlu0 %v1592
      %v1703 = vpop.xlane.xlu0 %1702
      %1704 = vmax.xlane.f32.xlu0 %v1595
      %v1705 = vpop.xlane.xlu0 %1704
      %1706 = vmax.xlane.f32.xlu0 %v1600
      %v1707 = vpop.xlane.xlu0 %1706
      %1708 = vmax.xlane.f32.xlu0 %v1603
      %v1709 = vpop.xlane.xlu0 %1708
      %1710 = vmax.xlane.f32.xlu0 %v1608
      %v1711 = vpop.xlane.xlu0 %1710
      %1712 = vmax.xlane.f32.xlu0 %v1611
      %v1713 = vpop.xlane.xlu0 %1712
      %1714 = vmax.xlane.f32.xlu0 %v1616
      %v1715 = vpop.xlane.xlu0 %1714
      %1716 = vmax.xlane.f32.xlu0 %v1619
      %v1717 = vpop.xlane.xlu0 %1716
      %1718 = vmax.xlane.f32.xlu0 %v1624
      %v1719 = vpop.xlane.xlu0 %1718
      %1720 = vmax.xlane.f32.xlu0 %v1627
      %v1721 = vpop.xlane.xlu0 %1720
      %1722 = vmax.xlane.f32.xlu0 %v1632
      %v1723 = vpop.xlane.xlu0 %1722
      %1724 = vmax.xlane.f32.xlu0 %v1635
      %v1725 = vpop.xlane.xlu0 %1724
      %1726 = vmax.xlane.f32.xlu0 %v1640
      %v1727 = vpop.xlane.xlu0 %1726
      %1728 = vmax.xlane.f32.xlu0 %v1643
      %v1729 = vpop.xlane.xlu0 %1728
      %1730 = vmax.xlane.f32.xlu0 %v1648
      %v1731 = vpop.xlane.xlu0 %1730
      %1732 = vmax.xlane.f32.xlu0 %v1651
      %v1733 = vpop.xlane.xlu0 %1732
      %1734 = vmax.xlane.f32.xlu0 %v1656
      %v1735 = vpop.xlane.xlu0 %1734
      %1736 = vmax.xlane.f32.xlu0 %v1659
      %v1737 = vpop.xlane.xlu0 %1736
      %1738 = vmax.xlane.f32.xlu0 %v1664
      %v1739 = vpop.xlane.xlu0 %1738
      %1740 = vmax.xlane.f32.xlu0 %v1667
      %v1741 = vpop.xlane.xlu0 %1740
      %1742 = vmax.xlane.f32.xlu0 %v1672
      %v1743 = vpop.xlane.xlu0 %1742
      %1744 = vmax.xlane.f32.xlu0 %v1675
      %v1745 = vpop.xlane.xlu0 %1744
      %1746 = vmax.xlane.f32.xlu0 %v1680
      %v1747 = vpop.xlane.xlu0 %1746
      %1748 = vmax.xlane.f32.xlu0 %v1683
      %v1749 = vpop.xlane.xlu0 %1748
      %v1750 = vsub.f32 %v1560, %v1687
      %v1751 = vsub.f32 %v1563, %v1689
      %v1752 = vsub.f32 %v1568, %v1691
      %v1753 = vsub.f32 %v1571, %v1693
      %v1754 = vsub.f32 %v1576, %v1695
      %v1755 = vsub.f32 %v1579, %v1697
      %v1756 = vsub.f32 %v1584, %v1699
      %v1757 = vsub.f32 %v1587, %v1701
      %v1758 = vsub.f32 %v1592, %v1703
      %v1759 = vsub.f32 %v1595, %v1705
      %v1760 = vsub.f32 %v1600, %v1707
      %v1761 = vsub.f32 %v1603, %v1709
      %v1762 = vsub.f32 %v1608, %v1711
      %v1763 = vsub.f32 %v1611, %v1713
      %v1764 = vsub.f32 %v1616, %v1715
      %v1765 = vsub.f32 %v1619, %v1717
      %v1766 = vsub.f32 %v1624, %v1719
      %v1767 = vsub.f32 %v1627, %v1721
      %v1768 = vsub.f32 %v1632, %v1723
      %v1769 = vsub.f32 %v1635, %v1725
      %v1770 = vsub.f32 %v1640, %v1727
      %v1771 = vsub.f32 %v1643, %v1729
      %v1772 = vsub.f32 %v1648, %v1731
      %v1773 = vsub.f32 %v1651, %v1733
      %v1774 = vsub.f32 %v1656, %v1735
      %v1775 = vsub.f32 %v1659, %v1737
      %v1776 = vsub.f32 %v1664, %v1739
      %v1777 = vsub.f32 %v1667, %v1741
      %v1778 = vsub.f32 %v1672, %v1743
      %v1779 = vsub.f32 %v1675, %v1745
      %v1780 = vsub.f32 %v1680, %v1747
      %v1781 = vsub.f32 %v1683, %v1749
      %v1782 = vmul.f32 %v1750, 1.442695
      %v1783 = vpow.pop %v1782
      %v1784 = vmul.f32 %v1751, 1.442695
      %v1785 = vpow.pop %v1784
      %v1786 = vmul.f32 %v1752, 1.442695
      %v1787 = vpow.pop %v1786
      %v1788 = vmul.f32 %v1753, 1.442695
      %v1789 = vpow.pop %v1788
      %v1790 = vmul.f32 %v1754, 1.442695
      %v1791 = vpow.pop %v1790
      %v1792 = vmul.f32 %v1755, 1.442695
      %v1793 = vpow.pop %v1792
      %v1794 = vmul.f32 %v1756, 1.442695
      %v1795 = vpow.pop %v1794
      %v1796 = vmul.f32 %v1757, 1.442695
      %v1797 = vpow.pop %v1796
      %v1798 = vmul.f32 %v1758, 1.442695
      %v1799 = vpow.pop %v1798
      %v1800 = vmul.f32 %v1759, 1.442695
      %v1801 = vpow.pop %v1800
      %v1802 = vmul.f32 %v1760, 1.442695
      %v1803 = vpow.pop %v1802
      %v1804 = vmul.f32 %v1761, 1.442695
      %v1805 = vpow.pop %v1804
      %v1806 = vmul.f32 %v1762, 1.442695
      %v1807 = vpow.pop %v1806
      %v1808 = vmul.f32 %v1763, 1.442695
      %v1809 = vpow.pop %v1808
      %v1810 = vmul.f32 %v1764, 1.442695
      %v1811 = vpow.pop %v1810
      %v1812 = vmul.f32 %v1765, 1.442695
      %v1813 = vpow.pop %v1812
      %v1814 = vmul.f32 %v1766, 1.442695
      %v1815 = vpow.pop %v1814
      %v1816 = vmul.f32 %v1767, 1.442695
      %v1817 = vpow.pop %v1816
      %v1818 = vmul.f32 %v1768, 1.442695
      %v1819 = vpow.pop %v1818
      %v1820 = vmul.f32 %v1769, 1.442695
      %v1821 = vpow.pop %v1820
      %v1822 = vmul.f32 %v1770, 1.442695
      %v1823 = vpow.pop %v1822
      %v1824 = vmul.f32 %v1771, 1.442695
      %v1825 = vpow.pop %v1824
      %v1826 = vmul.f32 %v1772, 1.442695
      %v1827 = vpow.pop %v1826
      %v1828 = vmul.f32 %v1773, 1.442695
      %v1829 = vpow.pop %v1828
      %v1830 = vmul.f32 %v1774, 1.442695
      %v1831 = vpow.pop %v1830
      %v1832 = vmul.f32 %v1775, 1.442695
      %v1833 = vpow.pop %v1832
      %v1834 = vmul.f32 %v1776, 1.442695
      %v1835 = vpow.pop %v1834
      %v1836 = vmul.f32 %v1777, 1.442695
      %v1837 = vpow.pop %v1836
      %v1838 = vmul.f32 %v1778, 1.442695
      %v1839 = vpow.pop %v1838
      %v1840 = vmul.f32 %v1779, 1.442695
      %v1841 = vpow.pop %v1840
      %v1842 = vmul.f32 %v1780, 1.442695
      %v1843 = vpow.pop %v1842
      %v1844 = vmul.f32 %v1781, 1.442695
      %v1845 = vpow.pop %v1844
      %1846 = vadd.xlane.f32.xlu0 %v1783
      %v1847 = vpop.xlane.xlu0 %1846
      %1848 = vadd.xlane.f32.xlu0 %v1785
      %v1849 = vpop.xlane.xlu0 %1848
      %1850 = vadd.xlane.f32.xlu0 %v1787
      %v1851 = vpop.xlane.xlu0 %1850
      %1852 = vadd.xlane.f32.xlu0 %v1789
      %v1853 = vpop.xlane.xlu0 %1852
      %1854 = vadd.xlane.f32.xlu0 %v1791
      %v1855 = vpop.xlane.xlu0 %1854
      %1856 = vadd.xlane.f32.xlu0 %v1793
      %v1857 = vpop.xlane.xlu0 %1856
      %1858 = vadd.xlane.f32.xlu0 %v1795
      %v1859 = vpop.xlane.xlu0 %1858
      %1860 = vadd.xlane.f32.xlu0 %v1797
      %v1861 = vpop.xlane.xlu0 %1860
      %1862 = vadd.xlane.f32.xlu0 %v1799
      %v1863 = vpop.xlane.xlu0 %1862
      %1864 = vadd.xlane.f32.xlu0 %v1801
      %v1865 = vpop.xlane.xlu0 %1864
      %1866 = vadd.xlane.f32.xlu0 %v1803
      %v1867 = vpop.xlane.xlu0 %1866
      %1868 = vadd.xlane.f32.xlu0 %v1805
      %v1869 = vpop.xlane.xlu0 %1868
      %1870 = vadd.xlane.f32.xlu0 %v1807
      %v1871 = vpop.xlane.xlu0 %1870
      %1872 = vadd.xlane.f32.xlu0 %v1809
      %v1873 = vpop.xlane.xlu0 %1872
      %1874 = vadd.xlane.f32.xlu0 %v1811
      %v1875 = vpop.xlane.xlu0 %1874
      %1876 = vadd.xlane.f32.xlu0 %v1813
      %v1877 = vpop.xlane.xlu0 %1876
      %1878 = vadd.xlane.f32.xlu0 %v1815
      %v1879 = vpop.xlane.xlu0 %1878
      %1880 = vadd.xlane.f32.xlu0 %v1817
      %v1881 = vpop.xlane.xlu0 %1880
      %1882 = vadd.xlane.f32.xlu0 %v1819
      %v1883 = vpop.xlane.xlu0 %1882
      %1884 = vadd.xlane.f32.xlu0 %v1821
      %v1885 = vpop.xlane.xlu0 %1884
      %1886 = vadd.xlane.f32.xlu0 %v1823
      %v1887 = vpop.xlane.xlu0 %1886
      %1888 = vadd.xlane.f32.xlu0 %v1825
      %v1889 = vpop.xlane.xlu0 %1888
      %1890 = vadd.xlane.f32.xlu0 %v1827
      %v1891 = vpop.xlane.xlu0 %1890
      %1892 = vadd.xlane.f32.xlu0 %v1829
      %v1893 = vpop.xlane.xlu0 %1892
      %1894 = vadd.xlane.f32.xlu0 %v1831
      %v1895 = vpop.xlane.xlu0 %1894
      %1896 = vadd.xlane.f32.xlu0 %v1833
      %v1897 = vpop.xlane.xlu0 %1896
      %1898 = vadd.xlane.f32.xlu0 %v1835
      %v1899 = vpop.xlane.xlu0 %1898
      %1900 = vadd.xlane.f32.xlu0 %v1837
      %v1901 = vpop.xlane.xlu0 %1900
      %1902 = vadd.xlane.f32.xlu0 %v1839
      %v1903 = vpop.xlane.xlu0 %1902
      %1904 = vadd.xlane.f32.xlu0 %v1841
      %v1905 = vpop.xlane.xlu0 %1904
      %1906 = vadd.xlane.f32.xlu0 %v1843
      %v1907 = vpop.xlane.xlu0 %1906
      %1908 = vadd.xlane.f32.xlu0 %v1845
      %v1909 = vpop.xlane.xlu0 %1908
      %v1910 = vrcp.pop %v1847
      %v1911 = vrcp.pop %v1849
      %v1912 = vrcp.pop %v1851
      %v1913 = vrcp.pop %v1853
      %v1914 = vrcp.pop %v1855
      %v1915 = vrcp.pop %v1857
      %v1916 = vrcp.pop %v1859
      %v1917 = vrcp.pop %v1861
      %v1918 = vrcp.pop %v1863
      %v1919 = vrcp.pop %v1865
      %v1920 = vrcp.pop %v1867
      %v1921 = vrcp.pop %v1869
      %v1922 = vrcp.pop %v1871
      %v1923 = vrcp.pop %v1873
      %v1924 = vrcp.pop %v1875
      %v1925 = vrcp.pop %v1877
      %v1926 = vrcp.pop %v1879
      %v1927 = vrcp.pop %v1881
      %v1928 = vrcp.pop %v1883
      %v1929 = vrcp.pop %v1885
      %v1930 = vrcp.pop %v1887
      %v1931 = vrcp.pop %v1889
      %v1932 = vrcp.pop %v1891
      %v1933 = vrcp.pop %v1893
      %v1934 = vrcp.pop %v1895
      %v1935 = vrcp.pop %v1897
      %v1936 = vrcp.pop %v1899
      %v1937 = vrcp.pop %v1901
      %v1938 = vrcp.pop %v1903
      %v1939 = vrcp.pop %v1905
      %v1940 = vrcp.pop %v1907
      %v1941 = vrcp.pop %v1909
      %v1942 = vmul.f32 %v1783, %v1910
      %v1943 = vmul.f32 %v1785, %v1911
      %v1944 = vmul.f32 %v1787, %v1912
      %v1945 = vmul.f32 %v1789, %v1913
      %v1946 = vmul.f32 %v1791, %v1914
      %v1947 = vmul.f32 %v1793, %v1915
      %v1948 = vmul.f32 %v1795, %v1916
      %v1949 = vmul.f32 %v1797, %v1917
      %v1950 = vmul.f32 %v1799, %v1918
      %v1951 = vmul.f32 %v1801, %v1919
      %v1952 = vmul.f32 %v1803, %v1920
      %v1953 = vmul.f32 %v1805, %v1921
      %v1954 = vmul.f32 %v1807, %v1922
      %v1955 = vmul.f32 %v1809, %v1923
      %v1956 = vmul.f32 %v1811, %v1924
      %v1957 = vmul.f32 %v1813, %v1925
      %v1958 = vmul.f32 %v1815, %v1926
      %v1959 = vmul.f32 %v1817, %v1927
      %v1960 = vmul.f32 %v1819, %v1928
      %v1961 = vmul.f32 %v1821, %v1929
      %v1962 = vmul.f32 %v1823, %v1930
      %v1963 = vmul.f32 %v1825, %v1931
      %v1964 = vmul.f32 %v1827, %v1932
      %v1965 = vmul.f32 %v1829, %v1933
      %v1966 = vmul.f32 %v1831, %v1934
      %v1967 = vmul.f32 %v1833, %v1935
      %v1968 = vmul.f32 %v1835, %v1936
      %v1969 = vmul.f32 %v1837, %v1937
      %v1970 = vmul.f32 %v1839, %v1938
      %v1971 = vmul.f32 %v1841, %v1939
      %v1972 = vmul.f32 %v1843, %v1940
      %v1973 = vmul.f32 %v1845, %v1941
      %vm1974 = vcmask 64512
      %1975 = vst.msk [vmem:[%s226] sm:$0xff] %vm1974, %v1942
      %1976 = vst.msk [vmem:[%s226 + $0x8] sm:$0xff] %vm1974, %v1943
      %1977 = vst.msk [vmem:[%s226 + $0x10] sm:$0xff] %vm1974, %v1944
      %1978 = vst.msk [vmem:[%s226 + $0x18] sm:$0xff] %vm1974, %v1945
      %1979 = vst.msk [vmem:[%s226 + $0x20] sm:$0xff] %vm1974, %v1946
      %1980 = vst.msk [vmem:[%s226 + $0x28] sm:$0xff] %vm1974, %v1947
      %1981 = vst.msk [vmem:[%s226 + $0x30] sm:$0xff] %vm1974, %v1948
      %1982 = vst.msk [vmem:[%s226 + $0x38] sm:$0xff] %vm1974, %v1949
      %1983 = vst.msk [vmem:[%s226 + $0x40] sm:$0xff] %vm1974, %v1950
      %1984 = vst.msk [vmem:[%s226 + $0x48] sm:$0xff] %vm1974, %v1951
      %1985 = vst.msk [vmem:[%s226 + $0x50] sm:$0xff] %vm1974, %v1952
      %1986 = vst.msk [vmem:[%s226 + $0x58] sm:$0xff] %vm1974, %v1953
      %1987 = vst.msk [vmem:[%s226 + $0x60] sm:$0xff] %vm1974, %v1954
      %1988 = vst.msk [vmem:[%s226 + $0x68] sm:$0xff] %vm1974, %v1955
      %1989 = vst.msk [vmem:[%s226 + $0x70] sm:$0xff] %vm1974, %v1956
      %1990 = vst.msk [vmem:[%s226 + $0x78] sm:$0xff] %vm1974, %v1957
      %1991 = vst.msk [vmem:[%s226 + $0x80] sm:$0xff] %vm1974, %v1958
      %1992 = vst.msk [vmem:[%s226 + $0x88] sm:$0xff] %vm1974, %v1959
      %1993 = vst.msk [vmem:[%s226 + $0x90] sm:$0xff] %vm1974, %v1960
      %1994 = vst.msk [vmem:[%s226 + $0x98] sm:$0xff] %vm1974, %v1961
      %1995 = vst.msk [vmem:[%s226 + $0xa0] sm:$0xff] %vm1974, %v1962
      %1996 = vst.msk [vmem:[%s226 + $0xa8] sm:$0xff] %vm1974, %v1963
      %1997 = vst.msk [vmem:[%s226 + $0xb0] sm:$0xff] %vm1974, %v1964
      %1998 = vst.msk [vmem:[%s226 + $0xb8] sm:$0xff] %vm1974, %v1965
      %1999 = vst.msk [vmem:[%s226 + $0xc0] sm:$0xff] %vm1974, %v1966
      %2000 = vst.msk [vmem:[%s226 + $0xc8] sm:$0xff] %vm1974, %v1967
      %2001 = vst.msk [vmem:[%s226 + $0xd0] sm:$0xff] %vm1974, %v1968
      %2002 = vst.msk [vmem:[%s226 + $0xd8] sm:$0xff] %vm1974, %v1969
      %2003 = vst.msk [vmem:[%s226 + $0xe0] sm:$0xff] %vm1974, %v1970
      %2004 = vst.msk [vmem:[%s226 + $0xe8] sm:$0xff] %vm1974, %v1971
      %2005 = vst.msk [vmem:[%s226 + $0xf0] sm:$0xff] %vm1974, %v1972
      %2006 = vst.msk [vmem:[%s226 + $0xf8] sm:$0xff] %vm1974, %v1973
      %s2007 = smul.u32 32, %s16
      %p2008 = scmp.lt.s32.totalorder %s2007, 63
      %s2009 = scalar_select %p2008, %s2007, 63
      %s2010 = smul.addr %s2009, 8
      %s2011 = scalar_lea.vmem %s5, %s2010
      // Predicated region
      $region41: #{critic_forward.1} parent=39 // pred_check
        %p2012 = pneg %p144
      $region42: #{critic_forward.1} parent=39 // pred_check_branch
        %2014 = sbr.rel (%p2012) target = $region44
      $region43: #{critic_forward.1} parent=39 // pred_region
        %s2015 = smul.u32 32, %s16
      $region44: #{critic_forward.1} parent=39 // pred_fallthru
        _
    $region40: #{critic_forward.1} parent=5 // pred_fallthru
      _
    %p2016 = scmp.le.s32.totalorder 2, %s11
    // Predicated region
    $region45: #{critic_forward.1} parent=5 // pred_check
      %p2017 = pneg %p2016
    $region46: #{critic_forward.1} parent=5 // pred_check_branch
      %2019 = sbr.rel (%p2017) target = $region48
    $region47: #{critic_forward.1} parent=5 // pred_region
      %s2020 = ssub.s32 %s11, 2
      // Predicated region
      $region49: #{critic_forward.1} parent=47 // pred_check
        %p2021 = pneg %p150
      $region50: #{critic_forward.1} parent=47 // pred_check_branch
        %2023 = sbr.rel (%p2021) target = $region52
      $region51: #{critic_forward.1} parent=47 // pred_region
        %s2024 = smul.u32 32, %s17
        %p2025 = scmp.lt.s32.totalorder %s2024, 63
        %s2026 = scalar_select %p2025, %s2024, 63
        %s2027 = smul.addr %s2026, 8
        %s2028 = scalar_lea.vmem %s5, %s2027
      $region52: #{critic_forward.1} parent=47 // pred_fallthru
        _
    $region48: #{critic_forward.1} parent=5 // pred_fallthru
      _
  $region6: #{critic_forward.1} parent=0 // loop_footer
    %s15 = sadd.s32 1, %s11
  $region7: #{critic_forward.1} parent=0 // loop_footer_branch
    %10 = sbr.rel target = $region3
  $region8: #{critic_forward.1} parent=0 // loop_exit
    _

</llo_original>
